<compile_context>
chip_gen: v7x
topology: tpu7x:2x2x1
jax: 0.10.0
libtpu: 0.0.40
codegen_flags: <defaults>
</compile_context>

<pallas_src>
import functools

import jax
import jax.numpy as jnp
from jax.experimental import pallas as pl
from jax.experimental.pallas import tpu as pltpu


GN_EPS = 1e-5                      # PyTorch GroupNorm default eps
VMEM_LIMIT_BYTES = 32 * 1024 * 1024


def _pass1_kernel(
    xyz_ref, xyzg_ref,          # point-cloud tiles, (3, TN) f32 (batch squeezed)
    wa_ref, ba_ref,             # backbone L1: (64, 3) f32, (64, 1) f32
    wb_ref, bb_ref,             # backbone L2: (64, 64) bf16, (64, 1) f32
    w1_ref, b1_ref,             # conv1:       (64, 128) bf16, (64, 1) f32
    h1_ref,                     # out: (64, TN) f32  pre-GroupNorm activations
    stats_ref,                  # out: (2, 128) f32  row 0 = mean, row 1 = var
    sm_ref,                     # SMEM (2,) f32      running [sum, M2] per sample
):
    j = pl.program_id(1)
    tn = xyz_ref.shape[1]

    # obs + goal stacked along lanes so the shared backbone runs once per tile.
    x_both = jnp.concatenate([xyz_ref[...], xyzg_ref[...]], axis=1)      # (3, 2TN)

    # Backbone layer 1 (K=3) on the VPU: three broadcast FMAs, no MXU pass.
    acc = wa_ref[:, 0:1] * x_both[0:1, :]
    acc = acc + wa_ref[:, 1:2] * x_both[1:2, :]
    acc = acc + wa_ref[:, 2:3] * x_both[2:3, :]
    h = jnp.maximum(acc + ba_ref[...], 0.0)                              # (64, 2TN) f32

    # Backbone layer 2: one bf16 MXU matmul covers both branches (2*TN lanes).
    f = jnp.dot(wb_ref[...], h.astype(jnp.bfloat16),
                preferred_element_type=jnp.float32)
    f = jnp.maximum(f + bb_ref[...], 0.0)                                # (64, 2TN) f32

    # conv1 as one K=128 bf16 matmul from a contiguous (128, TN) activation block
    # (rows 0:64 = obs features, rows 64:128 = goal features).
    f16 = f.astype(jnp.bfloat16)
    fcat = jnp.concatenate([f16[:, :tn], f16[:, tn:]], axis=0)           # (128, TN)
    h1 = jnp.dot(w1_ref[...], fcat,
                 preferred_element_type=jnp.float32) + b1_ref[...]       # (64, TN) f32
    h1_ref[...] = h1

    # GroupNorm(1, 64) statistics streamed across N tiles: per-tile (sum, M2)
    # combined with Chan's parallel-variance update (avoids E[x^2]-E[x]^2
    # cancellation across the whole sample).
    nb = float(h1.shape[0] * h1.shape[1])
    sb = jnp.sum(h1)
    mub = sb / nb
    db = h1 - mub
    m2b = jnp.sum(db * db)

    @pl.when(j == 0)
    def _():
        sm_ref[0] = sb
        sm_ref[1] = m2b

    @pl.when(j > 0)
    def _():
        na = nb * j.astype(jnp.float32)
        sa = sm_ref[0]
        m2a = sm_ref[1]
        delta = mub - sa / na
        sm_ref[0] = sa + sb
        sm_ref[1] = m2a + m2b + delta * delta * (na * nb) / (na + nb)

    # Publish running (mean, var) as broadcast rows; this output block is
    # revisited across j, so only the value written on the last tile (the full
    # per-sample statistics) lands in HBM.
    ntot = nb * (j + 1).astype(jnp.float32)
    ones_row = jnp.ones((1, 128), jnp.float32)
    stats_ref[...] = jnp.concatenate(
        [ones_row * (sm_ref[0] / ntot), ones_row * (sm_ref[1] / ntot)], axis=0)


def _pass2_kernel(
    h1_ref,                     # (64, TN) f32
    stats_ref,                  # (2, 128) f32  row 0 = mean, row 1 = var
    gamma_ref, beta_ref,        # GroupNorm affine: (64, 1) f32 each
    w2_ref, b2_ref,             # conv2: (num_classes, 64) bf16, (num_classes, 1) f32
    out_ref,                    # (num_classes, TN) f32
):
    s = stats_ref[...]
    mean = jnp.max(s[0:1, :])          # every lane holds the same value
    var = jnp.max(s[1:2, :])
    inv = jax.lax.rsqrt(var + GN_EPS)

    hn = (h1_ref[...] - mean) * inv * gamma_ref[...] + beta_ref[...]
    hr = jnp.maximum(hn, 0.0)          # ReLU; Dropout(0.5) in eval mode == identity

    y = jnp.dot(w2_ref[...], hr.astype(jnp.bfloat16),
                preferred_element_type=jnp.float32) + b2_ref[...]

    # log_softmax over the class (sublane) axis — lane-dense along N.
    m = jnp.max(y, axis=0, keepdims=True)
    z = y - m
    lse = jnp.log(jnp.sum(jnp.exp(z), axis=0, keepdims=True))
    out_ref[...] = (z - lse).astype(out_ref.dtype)


def _pick_tile_n(n):
    for cand in (2048, 1024, 512, 256, 128):
        if n % cand == 0:
            return cand
    return n  # small / non-128-divisible N: single full-width tile


def make_params(key, num_classes):
    ks = jax.random.split(key, 6)
    s = 0.1
    f32, bf16 = jnp.float32, jnp.bfloat16
    return {
        # Stand-in shared per-point backbone, channels-first weights (out, in).
        "wa": s * jax.random.normal(ks[0], (64, 3), f32),
        "ba": jnp.zeros((64, 1), f32),
        "wb": (s * jax.random.normal(ks[1], (64, 64), f32)).astype(bf16),
        "bb": jnp.zeros((64, 1), f32),
        # conv1: torch weight [64, 128, 1] -> single (64, 128) matmul weight.
        "w1": (s * jax.random.normal(ks[2], (64, 128), f32)).astype(bf16),
        "b1": s * jax.random.normal(ks[3], (64, 1), f32),
        # GroupNorm(1, 64) affine params (per-channel).
        "gamma": jnp.ones((64, 1), f32),
        "beta": jnp.zeros((64, 1), f32),
        # conv2: torch weight [num_classes, 64, 1] -> (num_classes, 64).
        "w2": (s * jax.random.normal(ks[4], (num_classes, 64), f32)).astype(bf16),
        "b2": s * jax.random.normal(ks[5], (num_classes, 1), f32),
    }


@functools.partial(jax.jit, static_argnames=("num_classes", "tile_n"))
def dense_predictor(xyz, xyz_goal, params, *, num_classes, tile_n=None):
    """xyz, xyz_goal: (B, 3, N) float32 (torch NCW). Returns (B, num_classes, N)."""
    B, C, N = xyz.shape
    assert C == 3
    if tile_n is None:
        tile_n = _pick_tile_n(N)
    assert N % tile_n == 0
    nj = N // tile_n

    xyz = xyz.astype(jnp.float32)
    xyz_goal = xyz_goal.astype(jnp.float32)

    def full_spec(shape):
        return pl.BlockSpec(shape, lambda b, j: (0,) * len(shape))

    pc_spec = pl.BlockSpec((pl.Squeezed(), 3, tile_n), lambda b, j: (b, 0, j))
    h1_spec = pl.BlockSpec((pl.Squeezed(), 64, tile_n), lambda b, j: (b, 0, j))
    stats_spec = pl.BlockSpec((pl.Squeezed(), 2, 128), lambda b, j: (b, 0, 0))
    out_spec = pl.BlockSpec((pl.Squeezed(), num_classes, tile_n),
                            lambda b, j: (b, 0, j))

    # ---- pass 1: backbone + conv1 + streamed GroupNorm statistics ------------
    cost1 = pl.CostEstimate(
        flops=int(B * N * (2 * 2 * 3 * 64 + 2 * 2 * 64 * 64 + 2 * 128 * 64)),
        transcendentals=0,
        bytes_accessed=int(B * N * (2 * 3 * 4 + 64 * 4) + B * 2 * 128 * 4 + 32768),
    )
    h1, stats = pl.pallas_call(
        _pass1_kernel,
        out_shape=(
            jax.ShapeDtypeStruct((B, 64, N), jnp.float32),
            jax.ShapeDtypeStruct((B, 2, 128), jnp.float32),
        ),
        grid_spec=pltpu.PrefetchScalarGridSpec(
            num_scalar_prefetch=0,
            grid=(B, nj),
            in_specs=[
                pc_spec, pc_spec,
                full_spec((64, 3)), full_spec((64, 1)),
                full_spec((64, 64)), full_spec((64, 1)),
                full_spec((64, 128)), full_spec((64, 1)),
            ],
            out_specs=(h1_spec, stats_spec),
            scratch_shapes=[pltpu.SMEM((2,), jnp.float32)],
        ),
        compiler_params=pltpu.CompilerParams(
            dimension_semantics=("parallel", "arbitrary"),
            vmem_limit_bytes=VMEM_LIMIT_BYTES,
        ),
        cost_estimate=cost1,
    )(
        xyz, xyz_goal,
        params["wa"], params["ba"], params["wb"], params["bb"],
        params["w1"], params["b1"],
    )

    # ---- pass 2: GroupNorm normalize + ReLU + conv2 + log_softmax ------------
    cost2 = pl.CostEstimate(
        flops=int(B * N * (2 * 64 * num_classes + 8 * 64)),
        transcendentals=int(B * N * (num_classes + 1)),
        bytes_accessed=int(B * N * (64 * 4 + num_classes * 4) + B * 2 * 128 * 4),
    )
    return pl.pallas_call(
        _pass2_kernel,
        out_shape=jax.ShapeDtypeStruct((B, num_classes, N), jnp.float32),
        grid_spec=pltpu.PrefetchScalarGridSpec(
            num_scalar_prefetch=0,
            grid=(B, nj),
            in_specs=[
                h1_spec, stats_spec,
                full_spec((64, 1)), full_spec((64, 1)),
                full_spec((num_classes, 64)), full_spec((num_classes, 1)),
            ],
            out_specs=out_spec,
        ),
        compiler_params=pltpu.CompilerParams(
            dimension_semantics=("parallel", "parallel"),
            vmem_limit_bytes=VMEM_LIMIT_BYTES,
        ),
        cost_estimate=cost2,
    )(h1, stats, params["gamma"], params["beta"], params["w2"], params["b2"])


def dense_predictor_ref(xyz, xyz_goal, params):
    """Pure-JAX reference mirroring the kernel's numerics (bf16 matmuls)."""
    def backbone(x):                                               # (B, 3, N)
        h = jnp.einsum("oc,bcn->bon", params["wa"], x,
                       preferred_element_type=jnp.float32)
        h = jnp.maximum(h + params["ba"][None], 0.0)
        f = jnp.einsum("oc,bcn->bon", params["wb"], h.astype(jnp.bfloat16),
                       preferred_element_type=jnp.float32)
        return jnp.maximum(f + params["bb"][None], 0.0)

    f_o = backbone(xyz)
    f_g = backbone(xyz_goal)
    fcat = jnp.concatenate([f_o, f_g], axis=1).astype(jnp.bfloat16)   # (B,128,N)
    h1 = jnp.einsum("oc,bcn->bon", params["w1"], fcat,
                    preferred_element_type=jnp.float32) + params["b1"][None]
    mu = jnp.mean(h1, axis=(1, 2), keepdims=True)
    var = jnp.mean((h1 - mu) ** 2, axis=(1, 2), keepdims=True)
    hn = (h1 - mu) * jax.lax.rsqrt(var + GN_EPS)
    hn = hn * params["gamma"][None] + params["beta"][None]
    hr = jnp.maximum(hn, 0.0)
    y = jnp.einsum("oc,bcn->bon", params["w2"], hr.astype(jnp.bfloat16),
                   preferred_element_type=jnp.float32) + params["b2"][None]
    return jax.nn.log_softmax(y, axis=1)


if __name__ == "__main__":
    key = jax.random.PRNGKey(0)
    k_in, k_goal, k_par = jax.random.split(key, 3)

    # Small shapes; tile_n=128 gives 4 N tiles per sample so the streamed
    # GroupNorm statistics path (multi-tile combine) is actually exercised.
    B, N, num_classes = 2, 512, 3
    xyz = jax.random.normal(k_in, (B, 3, N), jnp.float32)
    xyz_goal = jax.random.normal(k_goal, (B, 3, N), jnp.float32)
    params = make_params(k_par, num_classes)

    out = dense_predictor(xyz, xyz_goal, params, num_classes=num_classes,
                          tile_n=128)
    out = jax.block_until_ready(out)

    assert out.shape == (B, num_classes, N)
    # log_softmax sanity: exp(out) sums to 1 over the class dim
    assert jnp.allclose(jnp.sum(jnp.exp(out), axis=1), 1.0, atol=1e-4)
    # numerical check against a pure-JAX reference with matching bf16 matmuls
    ref = dense_predictor_ref(xyz, xyz_goal, params)
    assert jnp.allclose(out, ref, atol=2e-2, rtol=0.0), float(
        jnp.max(jnp.abs(out - ref)))
    print("KERNEL_OK")
</pallas_src>

<mosaic_0001>
module attributes {stable_mosaic.version = 11 : i64} {
  func.func @_pass1_kernel(%arg0: i32, %arg1: i32, %arg2: memref<1x3x128xf32, #tpu.memory_space<vmem>>, %arg3: memref<1x3x128xf32, #tpu.memory_space<vmem>>, %arg4: memref<64x3xf32, #tpu.memory_space<vmem>>, %arg5: memref<64x1xf32, #tpu.memory_space<vmem>>, %arg6: memref<64x64xbf16, #tpu.memory_space<vmem>>, %arg7: memref<64x1xf32, #tpu.memory_space<vmem>>, %arg8: memref<64x128xbf16, #tpu.memory_space<vmem>>, %arg9: memref<64x1xf32, #tpu.memory_space<vmem>>, %arg10: memref<1x64x128xf32, #tpu.memory_space<vmem>>, %arg11: memref<1x2x128xf32, #tpu.memory_space<vmem>>, %arg12: memref<2xf32, #tpu.memory_space<smem>>) attributes {dimension_semantics = [#tpu.dimension_semantics<parallel>, #tpu.dimension_semantics<arbitrary>], iteration_bounds = array<i64: 2, 4>, scalar_prefetch = 0 : i64, scratch_operands = 1 : i64, tpu.core_type = #tpu.core_type<tc>, window_params = [{transform_indices = @transform_0, window_bounds = array<i64: 1, 3, 128>}, {transform_indices = @transform_1, window_bounds = array<i64: 1, 3, 128>}, {pipeline_mode = #tpu.pipeline_mode<synchronous>, transform_indices = @transform_2, window_bounds = array<i64: 64, 3>}, {pipeline_mode = #tpu.pipeline_mode<synchronous>, transform_indices = @transform_3, window_bounds = array<i64: 64, 1>}, {pipeline_mode = #tpu.pipeline_mode<synchronous>, transform_indices = @transform_4, window_bounds = array<i64: 64, 64>}, {pipeline_mode = #tpu.pipeline_mode<synchronous>, transform_indices = @transform_5, window_bounds = array<i64: 64, 1>}, {pipeline_mode = #tpu.pipeline_mode<synchronous>, transform_indices = @transform_6, window_bounds = array<i64: 64, 128>}, {pipeline_mode = #tpu.pipeline_mode<synchronous>, transform_indices = @transform_7, window_bounds = array<i64: 64, 1>}, {transform_indices = @transform_8, window_bounds = array<i64: 1, 64, 128>}, {transform_indices = @transform_9, window_bounds = array<i64: 1, 2, 128>}]} {
    %c0 = arith.constant 0 : index
    %c0_0 = arith.constant 0 : index
    %c0_1 = arith.constant 0 : index
    %0 = vector.load %arg2[%c0, %c0_0, %c0_1] : memref<1x3x128xf32, #tpu.memory_space<vmem>>, vector<1x3x128xf32>
    %1 = vector.shape_cast %0 : vector<1x3x128xf32> to vector<3x128xf32>
    %c0_2 = arith.constant 0 : index
    %c0_3 = arith.constant 0 : index
    %c0_4 = arith.constant 0 : index
    %2 = vector.load %arg3[%c0_2, %c0_3, %c0_4] : memref<1x3x128xf32, #tpu.memory_space<vmem>>, vector<1x3x128xf32>
    %3 = vector.shape_cast %2 : vector<1x3x128xf32> to vector<3x128xf32>
    %4 = tpu.concatenate %1, %3 in 1 : vector<3x128xf32>, vector<3x128xf32> -> vector<3x256xf32>
    %c0_5 = arith.constant 0 : index
    %c0_6 = arith.constant 0 : index
    %5 = vector.load %arg4[%c0_5, %c0_6] : memref<64x3xf32, #tpu.memory_space<vmem>>, vector<64x1xf32>
    %6 = vector.extract_strided_slice %4 {offsets = [0, 0], sizes = [1, 256], strides = [1, 1]} : vector<3x256xf32> to vector<1x256xf32>
    %7 = vector.broadcast %5 : vector<64x1xf32> to vector<64x256xf32>
    %8 = vector.broadcast %6 : vector<1x256xf32> to vector<64x256xf32>
    %9 = arith.mulf %7, %8 : vector<64x256xf32>
    %c0_7 = arith.constant 0 : index
    %c1 = arith.constant 1 : index
    %10 = vector.load %arg4[%c0_7, %c1] : memref<64x3xf32, #tpu.memory_space<vmem>>, vector<64x1xf32>
    %11 = vector.extract_strided_slice %4 {offsets = [1, 0], sizes = [1, 256], strides = [1, 1]} : vector<3x256xf32> to vector<1x256xf32>
    %12 = vector.broadcast %10 : vector<64x1xf32> to vector<64x256xf32>
    %13 = vector.broadcast %11 : vector<1x256xf32> to vector<64x256xf32>
    %14 = arith.mulf %12, %13 : vector<64x256xf32>
    %15 = arith.addf %9, %14 : vector<64x256xf32>
    %c0_8 = arith.constant 0 : index
    %c2 = arith.constant 2 : index
    %16 = vector.load %arg4[%c0_8, %c2] : memref<64x3xf32, #tpu.memory_space<vmem>>, vector<64x1xf32>
    %17 = vector.extract_strided_slice %4 {offsets = [2, 0], sizes = [1, 256], strides = [1, 1]} : vector<3x256xf32> to vector<1x256xf32>
    %18 = vector.broadcast %16 : vector<64x1xf32> to vector<64x256xf32>
    %19 = vector.broadcast %17 : vector<1x256xf32> to vector<64x256xf32>
    %20 = arith.mulf %18, %19 : vector<64x256xf32>
    %21 = arith.addf %15, %20 : vector<64x256xf32>
    %c0_9 = arith.constant 0 : index
    %c0_10 = arith.constant 0 : index
    %22 = vector.load %arg5[%c0_9, %c0_10] : memref<64x1xf32, #tpu.memory_space<vmem>>, vector<64x1xf32>
    %23 = vector.broadcast %22 : vector<64x1xf32> to vector<64x256xf32>
    %24 = arith.addf %21, %23 : vector<64x256xf32>
    %cst = arith.constant 0.000000e+00 : f32
    %25 = vector.broadcast %cst : f32 to vector<64x256xf32>
    %26 = arith.maximumf %24, %25 : vector<64x256xf32>
    %c0_11 = arith.constant 0 : index
    %c0_12 = arith.constant 0 : index
    %27 = vector.load %arg6[%c0_11, %c0_12] : memref<64x64xbf16, #tpu.memory_space<vmem>>, vector<64x64xbf16>
    %28 = arith.truncf %26 : vector<64x256xf32> to vector<64x256xbf16>
    %cst_13 = arith.constant dense<0.000000e+00> : vector<64x256xf32>
    %29 = tpu.matmul %27, %28, %cst_13 {dimension_numbers = #tpu.dot_dimension_numbers<[1], [0], [0], [1], [0, 0, 1, 1], [], []>} : vector<64x64xbf16>, vector<64x256xbf16>, vector<64x256xf32> -> vector<64x256xf32>
    %c0_14 = arith.constant 0 : index
    %c0_15 = arith.constant 0 : index
    %30 = vector.load %arg7[%c0_14, %c0_15] : memref<64x1xf32, #tpu.memory_space<vmem>>, vector<64x1xf32>
    %31 = vector.broadcast %30 : vector<64x1xf32> to vector<64x256xf32>
    %32 = arith.addf %29, %31 : vector<64x256xf32>
    %cst_16 = arith.constant 0.000000e+00 : f32
    %33 = vector.broadcast %cst_16 : f32 to vector<64x256xf32>
    %34 = arith.maximumf %32, %33 : vector<64x256xf32>
    %35 = arith.truncf %34 : vector<64x256xf32> to vector<64x256xbf16>
    %36 = vector.extract_strided_slice %35 {offsets = [0, 0], sizes = [64, 128], strides = [1, 1]} : vector<64x256xbf16> to vector<64x128xbf16>
    %37 = vector.extract_strided_slice %35 {offsets = [0, 128], sizes = [64, 128], strides = [1, 1]} : vector<64x256xbf16> to vector<64x128xbf16>
    %38 = tpu.concatenate %36, %37 in 0 : vector<64x128xbf16>, vector<64x128xbf16> -> vector<128x128xbf16>
    %c0_17 = arith.constant 0 : index
    %c0_18 = arith.constant 0 : index
    %39 = vector.load %arg8[%c0_17, %c0_18] : memref<64x128xbf16, #tpu.memory_space<vmem>>, vector<64x128xbf16>
    %cst_19 = arith.constant dense<0.000000e+00> : vector<64x128xf32>
    %40 = tpu.matmul %39, %38, %cst_19 {dimension_numbers = #tpu.dot_dimension_numbers<[1], [0], [0], [1], [0, 0, 1, 1], [], []>} : vector<64x128xbf16>, vector<128x128xbf16>, vector<64x128xf32> -> vector<64x128xf32>
    %c0_20 = arith.constant 0 : index
    %c0_21 = arith.constant 0 : index
    %41 = vector.load %arg9[%c0_20, %c0_21] : memref<64x1xf32, #tpu.memory_space<vmem>>, vector<64x1xf32>
    %42 = vector.broadcast %41 : vector<64x1xf32> to vector<64x128xf32>
    %43 = arith.addf %40, %42 : vector<64x128xf32>
    %c0_22 = arith.constant 0 : index
    %c0_23 = arith.constant 0 : index
    %c0_24 = arith.constant 0 : index
    %44 = vector.load %arg10[%c0_22, %c0_23, %c0_24] : memref<1x64x128xf32, #tpu.memory_space<vmem>>, vector<1x64x128xf32>
    %45 = vector.shape_cast %44 : vector<1x64x128xf32> to vector<64x128xf32>
    %46 = vector.shape_cast %43 : vector<64x128xf32> to vector<1x64x128xf32>
    tpu.vector_store %arg10[%c0_22, %c0_23, %c0_24], %46 {strides = array<i32>} : memref<1x64x128xf32, #tpu.memory_space<vmem>>, vector<1x64x128xf32>,
    %47 = vector.shape_cast %43 : vector<64x128xf32> to vector<1x64x128xf32>
    %cst_25 = arith.constant dense<0.000000e+00> : vector<1xf32>
    %48 = vector.multi_reduction <add>, %47, %cst_25 [1, 2] : vector<1x64x128xf32> to vector<1xf32>
    %49 = vector.shape_cast %48 : vector<1xf32> to vector<1x1x1xf32>
    %50 = vector.extract %49[0, 0, 0] : f32 from vector<1x1x1xf32>
    %cst_26 = arith.constant 8.192000e+03 : f32
    %51 = arith.divf %50, %cst_26 : f32
    %52 = vector.broadcast %51 : f32 to vector<64x128xf32>
    %53 = arith.subf %43, %52 : vector<64x128xf32>
    %54 = arith.mulf %53, %53 : vector<64x128xf32>
    %55 = vector.shape_cast %54 : vector<64x128xf32> to vector<1x64x128xf32>
    %cst_27 = arith.constant dense<0.000000e+00> : vector<1xf32>
    %56 = vector.multi_reduction <add>, %55, %cst_27 [1, 2] : vector<1x64x128xf32> to vector<1xf32>
    %57 = vector.shape_cast %56 : vector<1xf32> to vector<1x1x1xf32>
    %58 = vector.extract %57[0, 0, 0] : f32 from vector<1x1x1xf32>
    %c0_i32 = arith.constant 0 : i32
    %59 = arith.cmpi eq, %arg1, %c0_i32 : i32
    %60 = arith.extui %59 : i1 to i32
    %c0_i32_28 = arith.constant 0 : i32
    %61 = arith.cmpi ne, %60, %c0_i32_28 : i32
    scf.if %61 {
      %c0_38 = arith.constant 0 : index
      %81 = memref.load %arg12[%c0_38] : memref<2xf32, #tpu.memory_space<smem>>
      memref.store %50, %arg12[%c0_38] : memref<2xf32, #tpu.memory_space<smem>>
      %c1_39 = arith.constant 1 : index
      %82 = memref.load %arg12[%c1_39] : memref<2xf32, #tpu.memory_space<smem>>
      memref.store %58, %arg12[%c1_39] : memref<2xf32, #tpu.memory_space<smem>>
    } else {
    }
    %c0_i32_29 = arith.constant 0 : i32
    %62 = arith.cmpi sgt, %arg1, %c0_i32_29 : i32
    %63 = arith.extui %62 : i1 to i32
    %c0_i32_30 = arith.constant 0 : i32
    %64 = arith.cmpi ne, %63, %c0_i32_30 : i32
    scf.if %64 {
      %81 = arith.sitofp %arg1 : i32 to f32
      %cst_38 = arith.constant 8.192000e+03 : f32
      %82 = arith.mulf %cst_38, %81 : f32
      %c0_39 = arith.constant 0 : index
      %83 = memref.load %arg12[%c0_39] : memref<2xf32, #tpu.memory_space<smem>>
      %c1_40 = arith.constant 1 : index
      %84 = memref.load %arg12[%c1_40] : memref<2xf32, #tpu.memory_space<smem>>
      %85 = arith.divf %83, %82 : f32
      %86 = arith.subf %51, %85 : f32
      %87 = arith.addf %83, %50 : f32
      %c0_41 = arith.constant 0 : index
      %88 = memref.load %arg12[%c0_41] : memref<2xf32, #tpu.memory_space<smem>>
      memref.store %87, %arg12[%c0_41] : memref<2xf32, #tpu.memory_space<smem>>
      %89 = arith.addf %84, %58 : f32
      %90 = arith.mulf %86, %86 : f32
      %cst_42 = arith.constant 8.192000e+03 : f32
      %91 = arith.mulf %82, %cst_42 : f32
      %92 = arith.mulf %90, %91 : f32
      %cst_43 = arith.constant 8.192000e+03 : f32
      %93 = arith.addf %82, %cst_43 : f32
      %94 = arith.divf %92, %93 : f32
      %95 = arith.addf %89, %94 : f32
      %c1_44 = arith.constant 1 : index
      %96 = memref.load %arg12[%c1_44] : memref<2xf32, #tpu.memory_space<smem>>
      memref.store %95, %arg12[%c1_44] : memref<2xf32, #tpu.memory_space<smem>>
    } else {
    }
    %c1_i32 = arith.constant 1 : i32
    %65 = arith.addi %arg1, %c1_i32 : i32
    %66 = arith.sitofp %65 : i32 to f32
    %cst_31 = arith.constant 8.192000e+03 : f32
    %67 = arith.mulf %cst_31, %66 : f32
    %cst_32 = arith.constant 1.000000e+00 : f32
    %68 = vector.broadcast %cst_32 : f32 to vector<1x128xf32>
    %c0_33 = arith.constant 0 : index
    %69 = memref.load %arg12[%c0_33] : memref<2xf32, #tpu.memory_space<smem>>
    %70 = arith.divf %69, %67 : f32
    %71 = vector.broadcast %70 : f32 to vector<1x128xf32>
    %72 = arith.mulf %68, %71 : vector<1x128xf32>
    %c1_34 = arith.constant 1 : index
    %73 = memref.load %arg12[%c1_34] : memref<2xf32, #tpu.memory_space<smem>>
    %74 = arith.divf %73, %67 : f32
    %75 = vector.broadcast %74 : f32 to vector<1x128xf32>
    %76 = arith.mulf %68, %75 : vector<1x128xf32>
    %77 = tpu.concatenate %72, %76 in 0 : vector<1x128xf32>, vector<1x128xf32> -> vector<2x128xf32>
    %c0_35 = arith.constant 0 : index
    %c0_36 = arith.constant 0 : index
    %c0_37 = arith.constant 0 : index
    %78 = vector.load %arg11[%c0_35, %c0_36, %c0_37] : memref<1x2x128xf32, #tpu.memory_space<vmem>>, vector<1x2x128xf32>
    %79 = vector.shape_cast %78 : vector<1x2x128xf32> to vector<2x128xf32>
    %80 = vector.shape_cast %77 : vector<2x128xf32> to vector<1x2x128xf32>
    tpu.vector_store %arg11[%c0_35, %c0_36, %c0_37], %80 {strides = array<i32>} : memref<1x2x128xf32, #tpu.memory_space<vmem>>, vector<1x2x128xf32>,
    return
  }
  func.func @transform_0(%arg0: i32, %arg1: i32) -> (i32, i32, i32) {
    %c0_i32 = arith.constant 0 : i32
    %c0_i32_0 = arith.constant 0 : i32
    return %arg0, %c0_i32, %arg1 : i32, i32, i32
  }
  func.func @transform_1(%arg0: i32, %arg1: i32) -> (i32, i32, i32) {
    %c0_i32 = arith.constant 0 : i32
    %c0_i32_0 = arith.constant 0 : i32
    return %arg0, %c0_i32, %arg1 : i32, i32, i32
  }
  func.func @transform_2(%arg0: i32, %arg1: i32) -> (i32, i32) {
    %c0_i32 = arith.constant 0 : i32
    %c0_i32_0 = arith.constant 0 : i32
    %c0_i32_1 = arith.constant 0 : i32
    return %c0_i32, %c0_i32_0 : i32, i32
  }
  func.func @transform_3(%arg0: i32, %arg1: i32) -> (i32, i32) {
    %c0_i32 = arith.constant 0 : i32
    %c0_i32_0 = arith.constant 0 : i32
    %c0_i32_1 = arith.constant 0 : i32
    return %c0_i32, %c0_i32_0 : i32, i32
  }
  func.func @transform_4(%arg0: i32, %arg1: i32) -> (i32, i32) {
    %c0_i32 = arith.constant 0 : i32
    %c0_i32_0 = arith.constant 0 : i32
    %c0_i32_1 = arith.constant 0 : i32
    return %c0_i32, %c0_i32_0 : i32, i32
  }
  func.func @transform_5(%arg0: i32, %arg1: i32) -> (i32, i32) {
    %c0_i32 = arith.constant 0 : i32
    %c0_i32_0 = arith.constant 0 : i32
    %c0_i32_1 = arith.constant 0 : i32
    return %c0_i32, %c0_i32_0 : i32, i32
  }
  func.func @transform_6(%arg0: i32, %arg1: i32) -> (i32, i32) {
    %c0_i32 = arith.constant 0 : i32
    %c0_i32_0 = arith.constant 0 : i32
    %c0_i32_1 = arith.constant 0 : i32
    return %c0_i32, %c0_i32_0 : i32, i32
  }
  func.func @transform_7(%arg0: i32, %arg1: i32) -> (i32, i32) {
    %c0_i32 = arith.constant 0 : i32
    %c0_i32_0 = arith.constant 0 : i32
    %c0_i32_1 = arith.constant 0 : i32
    return %c0_i32, %c0_i32_0 : i32, i32
  }
  func.func @transform_8(%arg0: i32, %arg1: i32) -> (i32, i32, i32) {
    %c0_i32 = arith.constant 0 : i32
    %c0_i32_0 = arith.constant 0 : i32
    return %arg0, %c0_i32, %arg1 : i32, i32, i32
  }
  func.func @transform_9(%arg0: i32, %arg1: i32) -> (i32, i32, i32) {
    %c0_i32 = arith.constant 0 : i32
    %c0_i32_0 = arith.constant 0 : i32
    %c0_i32_1 = arith.constant 0 : i32
    return %arg0, %c0_i32, %c0_i32_0 : i32, i32, i32
  }
}

module attributes {stable_mosaic.version = 11 : i64} {
  func.func @_pass2_kernel(%arg0: i32, %arg1: i32, %arg2: memref<1x64x128xf32, #tpu.memory_space<vmem>>, %arg3: memref<1x2x128xf32, #tpu.memory_space<vmem>>, %arg4: memref<64x1xf32, #tpu.memory_space<vmem>>, %arg5: memref<64x1xf32, #tpu.memory_space<vmem>>, %arg6: memref<3x64xbf16, #tpu.memory_space<vmem>>, %arg7: memref<3x1xf32, #tpu.memory_space<vmem>>, %arg8: memref<1x3x128xf32, #tpu.memory_space<vmem>>) attributes {dimension_semantics = [#tpu.dimension_semantics<parallel>, #tpu.dimension_semantics<parallel>], iteration_bounds = array<i64: 2, 4>, scalar_prefetch = 0 : i64, scratch_operands = 0 : i64, tpu.core_type = #tpu.core_type<tc>, window_params = [{transform_indices = @transform_0, window_bounds = array<i64: 1, 64, 128>}, {transform_indices = @transform_1, window_bounds = array<i64: 1, 2, 128>}, {pipeline_mode = #tpu.pipeline_mode<synchronous>, transform_indices = @transform_2, window_bounds = array<i64: 64, 1>}, {pipeline_mode = #tpu.pipeline_mode<synchronous>, transform_indices = @transform_3, window_bounds = array<i64: 64, 1>}, {pipeline_mode = #tpu.pipeline_mode<synchronous>, transform_indices = @transform_4, window_bounds = array<i64: 3, 64>}, {pipeline_mode = #tpu.pipeline_mode<synchronous>, transform_indices = @transform_5, window_bounds = array<i64: 3, 1>}, {transform_indices = @transform_6, window_bounds = array<i64: 1, 3, 128>}]} {
    %c0 = arith.constant 0 : index
    %c0_0 = arith.constant 0 : index
    %c0_1 = arith.constant 0 : index
    %0 = vector.load %arg3[%c0, %c0_0, %c0_1] : memref<1x2x128xf32, #tpu.memory_space<vmem>>, vector<1x2x128xf32>
    %1 = vector.shape_cast %0 : vector<1x2x128xf32> to vector<2x128xf32>
    %2 = vector.extract_strided_slice %1 {offsets = [0, 0], sizes = [1, 128], strides = [1, 1]} : vector<2x128xf32> to vector<1x128xf32>
    %3 = vector.shape_cast %2 : vector<1x128xf32> to vector<1x1x128xf32>
    %cst = arith.constant dense<0xFF800000> : vector<1xf32>
    %4 = vector.multi_reduction <maximumf>, %3, %cst [1, 2] : vector<1x1x128xf32> to vector<1xf32>
    %5 = vector.shape_cast %4 : vector<1xf32> to vector<1x1x1xf32>
    %6 = vector.extract %5[0, 0, 0] : f32 from vector<1x1x1xf32>
    %7 = vector.extract_strided_slice %1 {offsets = [1, 0], sizes = [1, 128], strides = [1, 1]} : vector<2x128xf32> to vector<1x128xf32>
    %8 = vector.shape_cast %7 : vector<1x128xf32> to vector<1x1x128xf32>
    %cst_2 = arith.constant dense<0xFF800000> : vector<1xf32>
    %9 = vector.multi_reduction <maximumf>, %8, %cst_2 [1, 2] : vector<1x1x128xf32> to vector<1xf32>
    %10 = vector.shape_cast %9 : vector<1xf32> to vector<1x1x1xf32>
    %11 = vector.extract %10[0, 0, 0] : f32 from vector<1x1x1xf32>
    %cst_3 = arith.constant 9.99999974E-6 : f32
    %12 = arith.addf %11, %cst_3 : f32
    %13 = math.rsqrt %12 : f32
    %c0_4 = arith.constant 0 : index
    %c0_5 = arith.constant 0 : index
    %c0_6 = arith.constant 0 : index
    %14 = vector.load %arg2[%c0_4, %c0_5, %c0_6] : memref<1x64x128xf32, #tpu.memory_space<vmem>>, vector<1x64x128xf32>
    %15 = vector.shape_cast %14 : vector<1x64x128xf32> to vector<64x128xf32>
    %16 = vector.broadcast %6 : f32 to vector<64x128xf32>
    %17 = arith.subf %15, %16 : vector<64x128xf32>
    %18 = vector.broadcast %13 : f32 to vector<64x128xf32>
    %19 = arith.mulf %17, %18 : vector<64x128xf32>
    %c0_7 = arith.constant 0 : index
    %c0_8 = arith.constant 0 : index
    %20 = vector.load %arg4[%c0_7, %c0_8] : memref<64x1xf32, #tpu.memory_space<vmem>>, vector<64x1xf32>
    %21 = vector.broadcast %20 : vector<64x1xf32> to vector<64x128xf32>
    %22 = arith.mulf %19, %21 : vector<64x128xf32>
    %c0_9 = arith.constant 0 : index
    %c0_10 = arith.constant 0 : index
    %23 = vector.load %arg5[%c0_9, %c0_10] : memref<64x1xf32, #tpu.memory_space<vmem>>, vector<64x1xf32>
    %24 = vector.broadcast %23 : vector<64x1xf32> to vector<64x128xf32>
    %25 = arith.addf %22, %24 : vector<64x128xf32>
    %cst_11 = arith.constant 0.000000e+00 : f32
    %26 = vector.broadcast %cst_11 : f32 to vector<64x128xf32>
    %27 = arith.maximumf %25, %26 : vector<64x128xf32>
    %c0_12 = arith.constant 0 : index
    %c0_13 = arith.constant 0 : index
    %28 = vector.load %arg6[%c0_12, %c0_13] : memref<3x64xbf16, #tpu.memory_space<vmem>>, vector<3x64xbf16>
    %29 = arith.truncf %27 : vector<64x128xf32> to vector<64x128xbf16>
    %cst_14 = arith.constant dense<0.000000e+00> : vector<3x128xf32>
    %30 = tpu.matmul %28, %29, %cst_14 {dimension_numbers = #tpu.dot_dimension_numbers<[1], [0], [0], [1], [0, 0, 1, 1], [], []>} : vector<3x64xbf16>, vector<64x128xbf16>, vector<3x128xf32> -> vector<3x128xf32>
    %c0_15 = arith.constant 0 : index
    %c0_16 = arith.constant 0 : index
    %31 = vector.load %arg7[%c0_15, %c0_16] : memref<3x1xf32, #tpu.memory_space<vmem>>, vector<3x1xf32>
    %32 = vector.broadcast %31 : vector<3x1xf32> to vector<3x128xf32>
    %33 = arith.addf %30, %32 : vector<3x128xf32>
    %cst_17 = arith.constant dense<0xFF800000> : vector<128xf32>
    %34 = vector.multi_reduction <maximumf>, %33, %cst_17 [0] : vector<3x128xf32> to vector<128xf32>
    %35 = vector.shape_cast %34 : vector<128xf32> to vector<1x128xf32>
    %36 = vector.broadcast %35 : vector<1x128xf32> to vector<3x128xf32>
    %37 = arith.subf %33, %36 : vector<3x128xf32>
    %38 = math.exp %37 : vector<3x128xf32>
    %cst_18 = arith.constant dense<0.000000e+00> : vector<128xf32>
    %39 = vector.multi_reduction <add>, %38, %cst_18 [0] : vector<3x128xf32> to vector<128xf32>
    %40 = vector.shape_cast %39 : vector<128xf32> to vector<1x128xf32>
    %41 = math.log %40 : vector<1x128xf32>
    %42 = vector.broadcast %41 : vector<1x128xf32> to vector<3x128xf32>
    %43 = arith.subf %37, %42 : vector<3x128xf32>
    %c0_19 = arith.constant 0 : index
    %c0_20 = arith.constant 0 : index
    %c0_21 = arith.constant 0 : index
    %44 = vector.load %arg8[%c0_19, %c0_20, %c0_21] : memref<1x3x128xf32, #tpu.memory_space<vmem>>, vector<1x3x128xf32>
    %45 = vector.shape_cast %44 : vector<1x3x128xf32> to vector<3x128xf32>
    %46 = vector.shape_cast %43 : vector<3x128xf32> to vector<1x3x128xf32>
    tpu.vector_store %arg8[%c0_19, %c0_20, %c0_21], %46 {strides = array<i32>} : memref<1x3x128xf32, #tpu.memory_space<vmem>>, vector<1x3x128xf32>,
    return
  }
  func.func @transform_0(%arg0: i32, %arg1: i32) -> (i32, i32, i32) {
    %c0_i32 = arith.constant 0 : i32
    %c0_i32_0 = arith.constant 0 : i32
    return %arg0, %c0_i32, %arg1 : i32, i32, i32
  }
  func.func @transform_1(%arg0: i32, %arg1: i32) -> (i32, i32, i32) {
    %c0_i32 = arith.constant 0 : i32
    %c0_i32_0 = arith.constant 0 : i32
    %c0_i32_1 = arith.constant 0 : i32
    return %arg0, %c0_i32, %c0_i32_0 : i32, i32, i32
  }
  func.func @transform_2(%arg0: i32, %arg1: i32) -> (i32, i32) {
    %c0_i32 = arith.constant 0 : i32
    %c0_i32_0 = arith.constant 0 : i32
    %c0_i32_1 = arith.constant 0 : i32
    return %c0_i32, %c0_i32_0 : i32, i32
  }
  func.func @transform_3(%arg0: i32, %arg1: i32) -> (i32, i32) {
    %c0_i32 = arith.constant 0 : i32
    %c0_i32_0 = arith.constant 0 : i32
    %c0_i32_1 = arith.constant 0 : i32
    return %c0_i32, %c0_i32_0 : i32, i32
  }
  func.func @transform_4(%arg0: i32, %arg1: i32) -> (i32, i32) {
    %c0_i32 = arith.constant 0 : i32
    %c0_i32_0 = arith.constant 0 : i32
    %c0_i32_1 = arith.constant 0 : i32
    return %c0_i32, %c0_i32_0 : i32, i32
  }
  func.func @transform_5(%arg0: i32, %arg1: i32) -> (i32, i32) {
    %c0_i32 = arith.constant 0 : i32
    %c0_i32_0 = arith.constant 0 : i32
    %c0_i32_1 = arith.constant 0 : i32
    return %c0_i32, %c0_i32_0 : i32, i32
  }
  func.func @transform_6(%arg0: i32, %arg1: i32) -> (i32, i32, i32) {
    %c0_i32 = arith.constant 0 : i32
    %c0_i32_0 = arith.constant 0 : i32
    return %arg0, %c0_i32, %arg1 : i32, i32, i32
  }
}

</mosaic_0001>

<llo_original>
// kernel: dense_predictor.3
$region0: #{dense_predictor.3}
  #allocation0 [shape = 'u32[]', space=smem, size = 0x4, offset = 0x4, fixed_abs, tag = 'smem constant byte address 0x4 - core index']
  #allocation1 [shape = 'u32[144,128]{1,0:T(1,128)}', space=vmem, size = 0x12000, scoped, tag = 'internal scratch']
  %s0 = inlined_call_operand.vmem [shape: f32[2,64,512], index: 0, kind: input, shape index: {}]
  %s1 = inlined_call_operand.vmem [shape: f32[2,2,128], index: 1, kind: input, shape index: {}]
  %s2 = inlined_call_operand.vmem [shape: f32[64,1], index: 2, kind: input, shape index: {}]
  %s3 = inlined_call_operand.vmem [shape: f32[64,1], index: 3, kind: input, shape index: {}]
  %s4 = inlined_call_operand.vmem [shape: bf16[3,64], index: 4, kind: input, shape index: {}]
  %s5 = inlined_call_operand.vmem [shape: f32[3,1], index: 5, kind: input, shape index: {}]
  %s6 = inlined_call_operand.vmem [shape: f32[2,3,512], index: 6, kind: output, shape index: {}]
  %s7 = sld [smem:[#allocation0]]
  $region95: #{dense_predictor.3} parent=0
    _
  %s9 = ssub.s32 1, %s7
  %s10 = scalar_select 0, %s9, %s7
  $region1: #{dense_predictor.3} parent=0
    #allocation2 [shape = 'u8[65536]{0}', space=vmem, size = 0x10000, scoped, tag = 'input window, operand 0']
    loop: start=0, step=1, limit=10
    $region2: #{dense_predictor.3} parent=1 // loop_pre_header
      _
    $region3: #{dense_predictor.3} parent=1 // loop_header
      %s12 = sphi 0, %s16
      %p13 = scmp.ge.s32.totalorder %s12, 10
      %s19 = sphi 0, %s31
      %s20 = sphi 0, %s27
      %s21 = sphi 0, %s19
      %s22 = sphi 0, %s20
      %s23 = sphi 0, %s21
      %s24 = sphi 0, %s22
      %s36 = sphi 0, %s38
      %s39 = sphi 0, %s36
      %s40 = sphi 0, %s39
      %s56 = sphi 0, %s40
      %s62 = sphi 0, %s64
      %s65 = sphi 0, %s62
      %s66 = sphi 0, %s65
      %s82 = sphi 0, %s66
      %s86 = sphi 0, %s86
      %s88 = sphi 0, %s86
      %s89 = sphi 0, %s88
      %s103 = sphi 0, %s89
      %s107 = sphi 0, %s107
      %s109 = sphi 0, %s107
      %s110 = sphi 0, %s109
      %s124 = sphi 0, %s110
      %s128 = sphi 0, %s128
      %s130 = sphi 0, %s128
      %s131 = sphi 0, %s130
      %s145 = sphi 0, %s131
      %s149 = sphi 0, %s149
      %s151 = sphi 0, %s149
      %s152 = sphi 0, %s151
      %s166 = sphi 0, %s152
      %s174 = sphi 0, %s176
      %s177 = sphi 0, %s174
      %s178 = sphi 0, %s177
      %s194 = sphi 0, %s178
    $region4: #{dense_predictor.3} parent=1 // loop_header_branch
      %15 = sbr.rel (%p13) target = $region8
    $region5: #{dense_predictor.3} parent=1 // loop_body
      %s17 = ssub.s32 %s12, 1
      %s18 = ssub.s32 %s12, 2
      %s25 = sadd.s32 1, %s20
      %p26 = scmp.ge.s32.totalorder %s25, 4
      %s27 = scalar_select %p26, 0, %s25
      %s28 = sadd.s32 1, %s19
      %s29 = scalar_select %p26, %s28, %s19
      %p30 = scmp.ge.s32.totalorder %s29, 2
      %s31 = scalar_select %p30, 0, %s29
      %s32 = ssub.s32 %s19, %s31
      %s33 = ssub.s32 %s20, %s27
      %s34 = sor.u32 %s32, %s33
      %p35 = scmp.eq.s32.totalorder %s34, 0
      %s37 = sadd.s32 %s36, 1
      %s38 = scalar_select %p35, %s36, %s37
      %p41 = pneg %p35
      %p42 = scmp.eq.s32.totalorder %s12, 7
      %p43 = por %p41, %p42
      %p44 = scmp.ne.s32.totalorder %s36, %s39
      %p45 = scmp.eq.s32.totalorder %s12, 0
      %p46 = por %p44, %p45
      %p47 = scmp.ne.s32.totalorder %s36, %s39
      %p48 = scmp.eq.s32.totalorder %s17, 7
      %p49 = por %p47, %p48
      %p50 = scmp.ne.s32.totalorder %s39, %s40
      %p51 = scmp.eq.s32.totalorder %s17, 0
      %p52 = por %p50, %p51
      %p53 = scmp.ne.s32.totalorder %s39, %s40
      %p54 = scmp.eq.s32.totalorder %s18, 7
      %p55 = por %p53, %p54
      %p57 = scmp.ne.s32.totalorder %s40, %s56
      %p58 = scmp.eq.s32.totalorder %s18, 0
      %p59 = por %p57, %p58
      %s60 = ssub.s32 %s19, %s31
      %p61 = scmp.eq.s32.totalorder %s60, 0
      %s63 = sadd.s32 %s62, 1
      %s64 = scalar_select %p61, %s62, %s63
      %p67 = pneg %p61
      %p68 = scmp.eq.s32.totalorder %s12, 7
      %p69 = por %p67, %p68
      %p70 = scmp.ne.s32.totalorder %s62, %s65
      %p71 = scmp.eq.s32.totalorder %s12, 0
      %p72 = por %p70, %p71
      %p73 = scmp.ne.s32.totalorder %s62, %s65
      %p74 = scmp.eq.s32.totalorder %s17, 7
      %p75 = por %p73, %p74
      %p76 = scmp.ne.s32.totalorder %s65, %s66
      %p77 = scmp.eq.s32.totalorder %s17, 0
      %p78 = por %p76, %p77
      %p79 = scmp.ne.s32.totalorder %s65, %s66
      %p80 = scmp.eq.s32.totalorder %s18, 7
      %p81 = por %p79, %p80
      %p83 = scmp.ne.s32.totalorder %s66, %s82
      %p84 = scmp.eq.s32.totalorder %s18, 0
      %p85 = por %p83, %p84
      %s87 = sadd.s32 %s86, 1
      %p90 = scmp.eq.s32.totalorder %s12, 7
      %p91 = scmp.ne.s32.totalorder %s86, %s88
      %p92 = scmp.eq.s32.totalorder %s12, 0
      %p93 = por %p91, %p92
      %p94 = scmp.ne.s32.totalorder %s86, %s88
      %p95 = scmp.eq.s32.totalorder %s17, 7
      %p96 = por %p94, %p95
      %p97 = scmp.ne.s32.totalorder %s88, %s89
      %p98 = scmp.eq.s32.totalorder %s17, 0
      %p99 = por %p97, %p98
      %p100 = scmp.ne.s32.totalorder %s88, %s89
      %p101 = scmp.eq.s32.totalorder %s18, 7
      %p102 = por %p100, %p101
      %p104 = scmp.ne.s32.totalorder %s89, %s103
      %p105 = scmp.eq.s32.totalorder %s18, 0
      %p106 = por %p104, %p105
      %s108 = sadd.s32 %s107, 1
      %p111 = scmp.eq.s32.totalorder %s12, 7
      %p112 = scmp.ne.s32.totalorder %s107, %s109
      %p113 = scmp.eq.s32.totalorder %s12, 0
      %p114 = por %p112, %p113
      %p115 = scmp.ne.s32.totalorder %s107, %s109
      %p116 = scmp.eq.s32.totalorder %s17, 7
      %p117 = por %p115, %p116
      %p118 = scmp.ne.s32.totalorder %s109, %s110
      %p119 = scmp.eq.s32.totalorder %s17, 0
      %p120 = por %p118, %p119
      %p121 = scmp.ne.s32.totalorder %s109, %s110
      %p122 = scmp.eq.s32.totalorder %s18, 7
      %p123 = por %p121, %p122
      %p125 = scmp.ne.s32.totalorder %s110, %s124
      %p126 = scmp.eq.s32.totalorder %s18, 0
      %p127 = por %p125, %p126
      %s129 = sadd.s32 %s128, 1
      %p132 = scmp.eq.s32.totalorder %s12, 7
      %p133 = scmp.ne.s32.totalorder %s128, %s130
      %p134 = scmp.eq.s32.totalorder %s12, 0
      %p135 = por %p133, %p134
      %p136 = scmp.ne.s32.totalorder %s128, %s130
      %p137 = scmp.eq.s32.totalorder %s17, 7
      %p138 = por %p136, %p137
      %p139 = scmp.ne.s32.totalorder %s130, %s131
      %p140 = scmp.eq.s32.totalorder %s17, 0
      %p141 = por %p139, %p140
      %p142 = scmp.ne.s32.totalorder %s130, %s131
      %p143 = scmp.eq.s32.totalorder %s18, 7
      %p144 = por %p142, %p143
      %p146 = scmp.ne.s32.totalorder %s131, %s145
      %p147 = scmp.eq.s32.totalorder %s18, 0
      %p148 = por %p146, %p147
      %s150 = sadd.s32 %s149, 1
      %p153 = scmp.eq.s32.totalorder %s12, 7
      %p154 = scmp.ne.s32.totalorder %s149, %s151
      %p155 = scmp.eq.s32.totalorder %s12, 0
      %p156 = por %p154, %p155
      %p157 = scmp.ne.s32.totalorder %s149, %s151
      %p158 = scmp.eq.s32.totalorder %s17, 7
      %p159 = por %p157, %p158
      %p160 = scmp.ne.s32.totalorder %s151, %s152
      %p161 = scmp.eq.s32.totalorder %s17, 0
      %p162 = por %p160, %p161
      %p163 = scmp.ne.s32.totalorder %s151, %s152
      %p164 = scmp.eq.s32.totalorder %s18, 7
      %p165 = por %p163, %p164
      %p167 = scmp.ne.s32.totalorder %s152, %s166
      %p168 = scmp.eq.s32.totalorder %s18, 0
      %p169 = por %p167, %p168
      %s170 = ssub.s32 %s19, %s31
      %s171 = ssub.s32 %s20, %s27
      %s172 = sor.u32 %s170, %s171
      %p173 = scmp.eq.s32.totalorder %s172, 0
      %s175 = sadd.s32 %s174, 1
      %s176 = scalar_select %p173, %s174, %s175
      %p179 = pneg %p173
      %p180 = scmp.eq.s32.totalorder %s12, 7
      %p181 = por %p179, %p180
      %p182 = scmp.ne.s32.totalorder %s174, %s177
      %p183 = scmp.eq.s32.totalorder %s12, 0
      %p184 = por %p182, %p183
      %p185 = scmp.ne.s32.totalorder %s174, %s177
      %p186 = scmp.eq.s32.totalorder %s17, 7
      %p187 = por %p185, %p186
      %p188 = scmp.ne.s32.totalorder %s177, %s178
      %p189 = scmp.eq.s32.totalorder %s17, 0
      %p190 = por %p188, %p189
      %p191 = scmp.ne.s32.totalorder %s177, %s178
      %p192 = scmp.eq.s32.totalorder %s18, 7
      %p193 = por %p191, %p192
      %p195 = scmp.ne.s32.totalorder %s178, %s194
      %p196 = scmp.eq.s32.totalorder %s18, 0
      %p197 = por %p195, %p196
      %p198 = scmp.le.s32.totalorder 1, %s12
      %p199 = scmp.lt.s32.totalorder %s12, 9
      %p200 = pnand %p198, %p199
      %p201 = pneg %p200
      // Predicated region
      $region9: #{dense_predictor.3} parent=5 // pred_check
        _
      $region10: #{dense_predictor.3} parent=5 // pred_check_branch
        %203 = sbr.rel (%p200) target = $region12
      $region11: #{dense_predictor.3} parent=5 // pred_region
        %s204 = ssub.s32 %s12, 1
        // Predicated region
        $region13: #{dense_predictor.3} parent=11 // pred_check
          %p205 = pneg %p99
        $region14: #{dense_predictor.3} parent=11 // pred_check_branch
          %207 = sbr.rel (%p205) target = $region16
        $region15: #{dense_predictor.3} parent=11 // pred_region
          _
        $region16: #{dense_predictor.3} parent=11 // pred_fallthru
          _
        // Predicated region
        $region17: #{dense_predictor.3} parent=11 // pred_check
          %p208 = pneg %p120
        $region18: #{dense_predictor.3} parent=11 // pred_check_branch
          %210 = sbr.rel (%p208) target = $region20
        $region19: #{dense_predictor.3} parent=11 // pred_region
          _
        $region20: #{dense_predictor.3} parent=11 // pred_fallthru
          _
        // Predicated region
        $region21: #{dense_predictor.3} parent=11 // pred_check
          %p211 = pneg %p141
        $region22: #{dense_predictor.3} parent=11 // pred_check_branch
          %213 = sbr.rel (%p211) target = $region24
        $region23: #{dense_predictor.3} parent=11 // pred_region
          _
        $region24: #{dense_predictor.3} parent=11 // pred_fallthru
          _
        // Predicated region
        $region25: #{dense_predictor.3} parent=11 // pred_check
          %p214 = pneg %p162
        $region26: #{dense_predictor.3} parent=11 // pred_check_branch
          %216 = sbr.rel (%p214) target = $region28
        $region27: #{dense_predictor.3} parent=11 // pred_region
          _
        $region28: #{dense_predictor.3} parent=11 // pred_fallthru
          _
      $region12: #{dense_predictor.3} parent=5 // pred_fallthru
        _
      %p217 = scmp.lt.s32.totalorder %s12, 8
      // Predicated region
      $region29: #{dense_predictor.3} parent=5 // pred_check
        %p218 = pneg %p217
      $region30: #{dense_predictor.3} parent=5 // pred_check_branch
        %220 = sbr.rel (%p218) target = $region32
      $region31: #{dense_predictor.3} parent=5 // pred_region
        // Predicated region
        $region33: #{dense_predictor.3} parent=31 // pred_check
          %p221 = pneg %p46
        $region34: #{dense_predictor.3} parent=31 // pred_check_branch
          %223 = sbr.rel (%p221) target = $region36
        $region35: #{dense_predictor.3} parent=31 // pred_region
          %s224 = sand.u32 %s36, 1
          %s225 = sand.u32 %s36, 1
          %s226 = smul.addr %s225, 64
          %s227 = scalar_lea.vmem [#allocation2], %s226
          %s228 = smul.addr %s19, 32
          %s229 = sadd.s32 %s20, %s228
          %s230 = smul.addr %s229, 8
          %s231 = scalar_lea.vmem %s0, %s230
          // Predicated region
          $region37: #{dense_predictor.3} parent=35 // pred_check
            _
          $region38: #{dense_predictor.3} parent=35 // pred_check_branch
            %233 = sbr.rel (0) target = $region40
          $region39: #{dense_predictor.3} parent=35 // pred_region
            // Predicated region
            $region41: #{dense_predictor.3} parent=39 // pred_check
              _
            $region42: #{dense_predictor.3} parent=39 // pred_check_branch
              %235 = sbr.rel (0) target = $region44
            $region43: #{dense_predictor.3} parent=39 // pred_region
              // Predicated region
              $region56: #{dense_predictor.3} parent=43 // pred_check
                _
              $region57: #{dense_predictor.3} parent=43 // pred_check_branch
                %264 = sbr.rel (0) target = $region59
              $region58: #{dense_predictor.3} parent=43 // pred_region
                loop: start=0, step=1, limit=1
                $region60: #{dense_predictor.3} parent=58 // loop_pre_header
                  _
                $region61: #{dense_predictor.3} parent=58 // loop_header
                  %s266 = sphi 0, %s270
                  %p267 = scmp.ge.s32.totalorder %s266, 1
                  %s271 = sphi %s231, %s231
                  %s272 = sphi %s227, %s227
                $region62: #{dense_predictor.3} parent=58 // loop_header_branch
                  %269 = sbr.rel (%p267) target = $region66
                $region63: #{dense_predictor.3} parent=58 // loop_body
                  %v273 = vld [vmem:[%s271] sm:$0xff]
                  %274 = vst [vmem:[%s272] sm:$0xff] %v273
                  %v275 = vld [vmem:[%s271 + $0x20] sm:$0xff]
                  %276 = vst [vmem:[%s272 + $0x8] sm:$0xff] %v275
                  %v277 = vld [vmem:[%s271 + $0x40] sm:$0xff]
                  %278 = vst [vmem:[%s272 + $0x10] sm:$0xff] %v277
                  %v279 = vld [vmem:[%s271 + $0x60] sm:$0xff]
                  %280 = vst [vmem:[%s272 + $0x18] sm:$0xff] %v279
                  %v281 = vld [vmem:[%s271 + $0x80] sm:$0xff]
                  %282 = vst [vmem:[%s272 + $0x20] sm:$0xff] %v281
                  %v283 = vld [vmem:[%s271 + $0xa0] sm:$0xff]
                  %284 = vst [vmem:[%s272 + $0x28] sm:$0xff] %v283
                  %v285 = vld [vmem:[%s271 + $0xc0] sm:$0xff]
                  %286 = vst [vmem:[%s272 + $0x30] sm:$0xff] %v285
                  %v287 = vld [vmem:[%s271 + $0xe0] sm:$0xff]
                  %288 = vst [vmem:[%s272 + $0x38] sm:$0xff] %v287
                $region64: #{dense_predictor.3} parent=58 // loop_footer
                  %s270 = sadd.s32 1, %s266
                $region65: #{dense_predictor.3} parent=58 // loop_footer_branch
                  %265 = sbr.rel target = $region61
                $region66: #{dense_predictor.3} parent=58 // loop_exit
                  _
              $region59: #{dense_predictor.3} parent=43 // pred_fallthru
                _
              // Predicated region
              $region67: #{dense_predictor.3} parent=43 // pred_check
                _
              $region68: #{dense_predictor.3} parent=43 // pred_check_branch
                %290 = sbr.rel target = $region70
              $region69: #{dense_predictor.3} parent=43 // pred_region
                _
              $region70: #{dense_predictor.3} parent=43 // pred_fallthru
                _
            $region44: #{dense_predictor.3} parent=39 // pred_fallthru
              _
            // Predicated region
            $region45: #{dense_predictor.3} parent=39 // pred_check
              _
            $region46: #{dense_predictor.3} parent=39 // pred_check_branch
              %237 = sbr.rel target = $region48
            $region47: #{dense_predictor.3} parent=39 // pred_region
              loop: start=0, step=1, limit=1
              $region49: #{dense_predictor.3} parent=47 // loop_pre_header
                _
              $region50: #{dense_predictor.3} parent=47 // loop_header
                %s240 = sphi 0, %s244
                %p241 = scmp.ge.s32.totalorder %s240, 1
                %s245 = sphi %s231, %s231
                %s246 = sphi %s227, %s227
              $region51: #{dense_predictor.3} parent=47 // loop_header_branch
                %243 = sbr.rel (%p241) target = $region55
              $region52: #{dense_predictor.3} parent=47 // loop_body
                %v247 = vld [vmem:[%s245] sm:$0xff]
                %248 = vst [vmem:[%s246] sm:$0xff] %v247
                %v249 = vld [vmem:[%s245 + $0x20] sm:$0xff]
                %250 = vst [vmem:[%s246 + $0x8] sm:$0xff] %v249
                %v251 = vld [vmem:[%s245 + $0x40] sm:$0xff]
                %252 = vst [vmem:[%s246 + $0x10] sm:$0xff] %v251
                %v253 = vld [vmem:[%s245 + $0x60] sm:$0xff]
                %254 = vst [vmem:[%s246 + $0x18] sm:$0xff] %v253
                %v255 = vld [vmem:[%s245 + $0x80] sm:$0xff]
                %256 = vst [vmem:[%s246 + $0x20] sm:$0xff] %v255
                %v257 = vld [vmem:[%s245 + $0xa0] sm:$0xff]
                %258 = vst [vmem:[%s246 + $0x28] sm:$0xff] %v257
                %v259 = vld [vmem:[%s245 + $0xc0] sm:$0xff]
                %260 = vst [vmem:[%s246 + $0x30] sm:$0xff] %v259
                %v261 = vld [vmem:[%s245 + $0xe0] sm:$0xff]
                %262 = vst [vmem:[%s246 + $0x38] sm:$0xff] %v261
              $region53: #{dense_predictor.3} parent=47 // loop_footer
                %s244 = sadd.s32 1, %s240
              $region54: #{dense_predictor.3} parent=47 // loop_footer_branch
                %239 = sbr.rel target = $region50
              $region55: #{dense_predictor.3} parent=47 // loop_exit
                _
            $region48: #{dense_predictor.3} parent=39 // pred_fallthru
              _
          $region40: #{dense_predictor.3} parent=35 // pred_fallthru
            _
          %291 = vnop
        $region36: #{dense_predictor.3} parent=31 // pred_fallthru
          _
        // Predicated region
        $region71: #{dense_predictor.3} parent=31 // pred_check
          %p292 = pneg %p72
        $region72: #{dense_predictor.3} parent=31 // pred_check_branch
          %294 = sbr.rel (%p292) target = $region74
        $region73: #{dense_predictor.3} parent=31 // pred_region
          %p295 = scmp.lt.s32.totalorder %s19, 1
          %s296 = scalar_select %p295, %s19, 1
          %s297 = smul.addr %s296, 2
          %s298 = scalar_lea.vmem %s1, %s297
        $region74: #{dense_predictor.3} parent=31 // pred_fallthru
          _
      $region32: #{dense_predictor.3} parent=5 // pred_fallthru
        _
      %p299 = scmp.le.s32.totalorder 1, %s12
      %p300 = scmp.lt.s32.totalorder %s12, 9
      %p301 = pnand %p299, %p300
      %p302 = pneg %p301
      // Predicated region
      $region75: #{dense_predictor.3} parent=5 // pred_check
        _
      $region76: #{dense_predictor.3} parent=5 // pred_check_branch
        %304 = sbr.rel (%p301) target = $region78
      $region77: #{dense_predictor.3} parent=5 // pred_region
        %s305 = ssub.s32 %s12, 1
        %s306 = sand.u32 %s39, 1
        %s307 = sand.u32 %s39, 1
        %s308 = smul.addr %s307, 64
        %s309 = scalar_lea.vmem [#allocation2], %s308
        // Predicated region
        $region79: #{dense_predictor.3} parent=77 // pred_check
          %p310 = pneg %p52
        $region80: #{dense_predictor.3} parent=77 // pred_check_branch
          %312 = sbr.rel (%p310) target = $region82
        $region81: #{dense_predictor.3} parent=77 // pred_region
          _
        $region82: #{dense_predictor.3} parent=77 // pred_fallthru
          _
        %s313 = sand.u32 %s39, 1
        %s314 = sand.u32 %s39, 1
        %s315 = smul.addr %s314, 64
        %s316 = scalar_lea.vmem [#allocation2], %s315
        %p317 = pneg %p52
        %p318 = pneg %p49
        %p319 = scmp.lt.s32.totalorder %s21, 1
        %s320 = scalar_select %p319, %s21, 1
        %s321 = smul.addr %s320, 2
        %s322 = scalar_lea.vmem %s1, %s321
        %p323 = pneg %p78
        %p324 = pneg %p75
        %p325 = pneg %p99
        %p326 = pneg %p96
        %p327 = pneg %p120
        %p328 = pneg %p117
        %p329 = pneg %p141
        %p330 = pneg %p138
        %p331 = pneg %p162
        %p332 = pneg %p159
        %p333 = pneg %p190
        %p334 = pneg %p187
        %p335 = scmp.lt.s32.totalorder %s21, 1
        %s336 = scalar_select %p335, %s21, 1
        %p337 = scmp.lt.s32.totalorder %s22, 3
        %s338 = scalar_select %p337, %s22, 3
        %s339 = smul.addr %s336, 4
        %s340 = sadd.s32 %s338, %s339
        %s341 = smul.addr %s340, 4
        %s342 = scalar_lea.vmem %s6, %s341
        %p343 = scmp.lt.s32.totalorder %s21, 1
        %s344 = scalar_select %p343, %s21, 1
        %s345 = smul.addr %s344, 2
        %s346 = scalar_lea.vmem %s1, %s345
        %p347 = scmp.lt.s32.totalorder %s21, 1
        %s348 = scalar_select %p347, %s21, 1
        %p349 = scmp.lt.s32.totalorder %s22, 3
        %s350 = scalar_select %p349, %s22, 3
        %s351 = smul.addr %s348, 4
        %s352 = sadd.s32 %s350, %s351
        %s353 = smul.addr %s352, 4
        %s354 = scalar_lea.vmem %s6, %s353
        %v356 = vld [vmem:[%s346] sm:$0x3]
        %vm357 = vcmask 1040384
        %v358 = vsel %vm357, %v356, -inf
        %359 = vmax.xlane.f32.xlu0 %v358
        %v360 = vpop.xlane.xlu0 %359
        %v361 = vrot.slane %v360, 4
        %v362 = vmax.f32 %v360, %v361
        %v363 = vrot.slane %v362, 2
        %v364 = vmax.f32 %v362, %v363
        %v365 = vrot.slane %v364, 1
        %v366 = vmax.f32 %v364, %v365
        %s367 = vtos %v366
        %vm368 = vcmask 1041409
        %v369 = vsel %vm368, %v356, -inf
        %370 = vmax.xlane.f32.xlu0 %v369
        %v371 = vpop.xlane.xlu0 %370
        %v372 = vrot.slane %v371, 4
        %v373 = vmax.f32 %v371, %v372
        %v374 = vrot.slane %v373, 2
        %v375 = vmax.f32 %v373, %v374
        %v376 = vrot.slane %v375, 1
        %v377 = vmax.f32 %v375, %v376
        %s378 = vtos %v377
        %s379 = sadd.f32 %s378, 1e-05
        %v380 = vstv %s379
        %v381 = vrsqrt.pop %v380
        %s382 = vtos %v381
        %v383 = vld [vmem:[%s309] sm:$0xff]
        %v384 = vld [vmem:[%s309 + $0x8] sm:$0xff]
        %v385 = vld [vmem:[%s309 + $0x10] sm:$0xff]
        %v386 = vld [vmem:[%s309 + $0x18] sm:$0xff]
        %v387 = vld [vmem:[%s309 + $0x20] sm:$0xff]
        %v388 = vld [vmem:[%s309 + $0x28] sm:$0xff]
        %v389 = vld [vmem:[%s309 + $0x30] sm:$0xff]
        %v390 = vld [vmem:[%s309 + $0x38] sm:$0xff]
        %v391 = vstv %s367
        %v392 = vsub.f32 %v383, %v391
        %v393 = vsub.f32 %v384, %v391
        %v394 = vsub.f32 %v385, %v391
        %v395 = vsub.f32 %v386, %v391
        %v396 = vsub.f32 %v387, %v391
        %v397 = vsub.f32 %v388, %v391
        %v398 = vsub.f32 %v389, %v391
        %v399 = vsub.f32 %v390, %v391
        %v400 = vstv %s382
        %v401 = vmul.f32 %v392, %v400
        %v402 = vmul.f32 %v393, %v400
        %v403 = vmul.f32 %v394, %v400
        %v404 = vmul.f32 %v395, %v400
        %v405 = vmul.f32 %v396, %v400
        %v406 = vmul.f32 %v397, %v400
        %v407 = vmul.f32 %v398, %v400
        %v408 = vmul.f32 %v399, %v400
        %v409 = vld [vmem:[%s2] sm:$0xff]
        %v410 = vld [vmem:[%s2 + $0x8] sm:$0xff]
        %v411 = vld [vmem:[%s2 + $0x10] sm:$0xff]
        %v412 = vld [vmem:[%s2 + $0x18] sm:$0xff]
        %v413 = vld [vmem:[%s2 + $0x20] sm:$0xff]
        %v414 = vld [vmem:[%s2 + $0x28] sm:$0xff]
        %v415 = vld [vmem:[%s2 + $0x30] sm:$0xff]
        %v416 = vld [vmem:[%s2 + $0x38] sm:$0xff]
        %418 = vset.pattern.permute.xlu0 0
        %419 = vperm.xlu0 %418, %v409
        %v420 = vpop.permute.xlu0 %419
        %423 = vset.pattern.permute.xlu0 0
        %424 = vperm.xlu0 %423, %v410
        %v425 = vpop.permute.xlu0 %424
        %428 = vset.pattern.permute.xlu0 0
        %429 = vperm.xlu0 %428, %v411
        %v430 = vpop.permute.xlu0 %429
        %433 = vset.pattern.permute.xlu0 0
        %434 = vperm.xlu0 %433, %v412
        %v435 = vpop.permute.xlu0 %434
        %438 = vset.pattern.permute.xlu0 0
        %439 = vperm.xlu0 %438, %v413
        %v440 = vpop.permute.xlu0 %439
        %443 = vset.pattern.permute.xlu0 0
        %444 = vperm.xlu0 %443, %v414
        %v445 = vpop.permute.xlu0 %444
        %448 = vset.pattern.permute.xlu0 0
        %449 = vperm.xlu0 %448, %v415
        %v450 = vpop.permute.xlu0 %449
        %453 = vset.pattern.permute.xlu0 0
        %454 = vperm.xlu0 %453, %v416
        %v455 = vpop.permute.xlu0 %454
        %v457 = vmul.f32 %v401, %v420
        %v458 = vmul.f32 %v402, %v425
        %v459 = vmul.f32 %v403, %v430
        %v460 = vmul.f32 %v404, %v435
        %v461 = vmul.f32 %v405, %v440
        %v462 = vmul.f32 %v406, %v445
        %v463 = vmul.f32 %v407, %v450
        %v464 = vmul.f32 %v408, %v455
        %v465 = vld [vmem:[%s3] sm:$0xff]
        %v466 = vld [vmem:[%s3 + $0x8] sm:$0xff]
        %v467 = vld [vmem:[%s3 + $0x10] sm:$0xff]
        %v468 = vld [vmem:[%s3 + $0x18] sm:$0xff]
        %v469 = vld [vmem:[%s3 + $0x20] sm:$0xff]
        %v470 = vld [vmem:[%s3 + $0x28] sm:$0xff]
        %v471 = vld [vmem:[%s3 + $0x30] sm:$0xff]
        %v472 = vld [vmem:[%s3 + $0x38] sm:$0xff]
        %474 = vset.pattern.permute.xlu0 0
        %475 = vperm.xlu0 %474, %v465
        %v476 = vpop.permute.xlu0 %475
        %479 = vset.pattern.permute.xlu0 0
        %480 = vperm.xlu0 %479, %v466
        %v481 = vpop.permute.xlu0 %480
        %484 = vset.pattern.permute.xlu0 0
        %485 = vperm.xlu0 %484, %v467
        %v486 = vpop.permute.xlu0 %485
        %489 = vset.pattern.permute.xlu0 0
        %490 = vperm.xlu0 %489, %v468
        %v491 = vpop.permute.xlu0 %490
        %494 = vset.pattern.permute.xlu0 0
        %495 = vperm.xlu0 %494, %v469
        %v496 = vpop.permute.xlu0 %495
        %499 = vset.pattern.permute.xlu0 0
        %500 = vperm.xlu0 %499, %v470
        %v501 = vpop.permute.xlu0 %500
        %504 = vset.pattern.permute.xlu0 0
        %505 = vperm.xlu0 %504, %v471
        %v506 = vpop.permute.xlu0 %505
        %509 = vset.pattern.permute.xlu0 0
        %510 = vperm.xlu0 %509, %v472
        %v511 = vpop.permute.xlu0 %510
        %v513 = vadd.f32 %v457, %v476
        %v514 = vadd.f32 %v458, %v481
        %v515 = vadd.f32 %v459, %v486
        %v516 = vadd.f32 %v460, %v491
        %v517 = vadd.f32 %v461, %v496
        %v518 = vadd.f32 %v462, %v501
        %v519 = vadd.f32 %v463, %v506
        %v520 = vadd.f32 %v464, %v511
        %v521 = vmax.f32 %v513, 0.0
        %v522 = vmax.f32 %v514, 0.0
        %v523 = vmax.f32 %v515, 0.0
        %v524 = vmax.f32 %v516, 0.0
        %v525 = vmax.f32 %v517, 0.0
        %v526 = vmax.f32 %v518, 0.0
        %v527 = vmax.f32 %v519, 0.0
        %v528 = vmax.f32 %v520, 0.0
        %v529 = vld [vmem:[%s4] sm:$0x3]
        %v530 = vpack.c.bf16 %v522, %v521
        %v531 = vpack.c.bf16 %v524, %v523
        %v532 = vpack.c.bf16 %v526, %v525
        %v533 = vpack.c.bf16 %v528, %v527
        %v534 = vld [vmem:[%s5] sm:$0x7]
        %536 = vset.pattern.permute.xlu0 0
        %537 = vperm.xlu0 %536, %v534
        %v538 = vpop.permute.xlu0 %537
        %vm540 = vcmask 523264
        %v542 = vsel %vm540, %v529, 0
        %544 = vmatprep.subr.bf16.mxu0 0
        %545 = vmatpush1.bf16.msra.mxu0 %v530
        %546 = vmatprep.subr.bf16.mxu0 0
        %547 = vmatpush1.bf16.msra.mxu0 %v531
        %548 = vmatprep.subr.bf16.mxu0 0
        %549 = vmatpush1.bf16.msra.mxu0 %v532
        %550 = vmatprep.subr.bf16.mxu0 0
        %551 = vmatpush1.bf16.msra.mxu0 %v533
        %552 = vmatprep.subr.bf16.mxu0 0
        %553 = vmatpush1.bf16.msra.mxu0 0
        %554 = vmatprep.subr.bf16.mxu0 0
        %555 = vmatpush1.bf16.msra.mxu0 0
        %556 = vmatprep.subr.bf16.mxu0 0
        %557 = vmatpush1.bf16.msra.mxu0 0
        %558 = vmatprep.subr.bf16.mxu0 0
        %559 = vmatpush1.bf16.msra.mxu0 0
        %560 = vmatprep.subr.bf16.mxu0 0
        %561 = vmatpush1.bf16.msra.mxu0 0
        %562 = vmatprep.subr.bf16.mxu0 0
        %563 = vmatpush1.bf16.msra.mxu0 0
        %564 = vmatprep.subr.bf16.mxu0 0
        %565 = vmatpush1.bf16.msra.mxu0 0
        %566 = vmatprep.subr.bf16.mxu0 0
        %567 = vmatpush1.bf16.msra.mxu0 0
        %568 = vmatprep.subr.bf16.mxu0 0
        %569 = vmatpush1.bf16.msra.mxu0 0
        %570 = vmatprep.subr.bf16.mxu0 0
        %571 = vmatpush1.bf16.msra.mxu0 0
        %572 = vmatprep.subr.bf16.mxu0 0
        %573 = vmatpush1.bf16.msra.mxu0 0
        %574 = vmatprep.subr.bf16.mxu0 0
        %575 = vmatpush1.bf16.msra.mxu0 0
        %576 = vmatprep.mubr.bf16.mxu0 0
        %577 = vmatmul.mubr.bf16.gmra.mrb[0].mxu0 %v542
        %v578 = vpop.f32.mrb[0].mxu0
        %v579 = vadd.f32 %v538, %v578
        %v580 = vpop.f32.mrb[0].mxu0
        %v581 = vpop.f32.mrb[0].mxu0
        %v582 = vpop.f32.mrb[0].mxu0
        %583 = vdwg.mxu0
        %vm584 = vcmask 1042432
        %v585 = vsel %vm584, %v579, -inf
        %v586 = vrot.slane %v585, 4
        %v587 = vmax.f32 %v585, %v586
        %v588 = vrot.slane %v587, 2
        %v589 = vmax.f32 %v587, %v588
        %v590 = vrot.slane %v589, 1
        %v591 = vmax.f32 %v589, %v590
        %v592 = vsub.f32 %v579, %v591
        %v593 = vmul.f32 %v592, 1.442695
        %v594 = vpow.pop %v593
        %v595 = vsel %vm584, %v594, 0.0
        %v596 = vrot.slane %v595, 4
        %v597 = vadd.f32 %v595, %v596
        %v598 = vrot.slane %v597, 2
        %v599 = vadd.f32 %v597, %v598
        %v600 = vrot.slane %v599, 1
        %v601 = vadd.f32 %v599, %v600
        %v602 = vlog2.pop %v601
        %v603 = vmul.f32 %v602, 0.6931472
        %v604 = vsub.f32 %v592, %v603
        %605 = vst [vmem:[%s354] sm:$0x7] %v604
        %p606 = scmp.lt.s32.totalorder %s21, 1
        %s607 = scalar_select %p606, %s21, 1
        %p608 = scmp.lt.s32.totalorder %s22, 3
        %s609 = scalar_select %p608, %s22, 3
        %s610 = smul.addr %s607, 4
        %s611 = sadd.s32 %s609, %s610
        %s612 = smul.addr %s611, 4
        %s613 = scalar_lea.vmem %s6, %s612
        // Predicated region
        $region83: #{dense_predictor.3} parent=77 // pred_check
          %p614 = pneg %p187
        $region84: #{dense_predictor.3} parent=77 // pred_check_branch
          %616 = sbr.rel (%p614) target = $region86
        $region85: #{dense_predictor.3} parent=77 // pred_region
          _
        $region86: #{dense_predictor.3} parent=77 // pred_fallthru
          _
      $region78: #{dense_predictor.3} parent=5 // pred_fallthru
        _
      %p617 = scmp.le.s32.totalorder 2, %s12
      // Predicated region
      $region87: #{dense_predictor.3} parent=5 // pred_check
        %p618 = pneg %p617
      $region88: #{dense_predictor.3} parent=5 // pred_check_branch
        %620 = sbr.rel (%p618) target = $region90
      $region89: #{dense_predictor.3} parent=5 // pred_region
        %s621 = ssub.s32 %s12, 2
        // Predicated region
        $region91: #{dense_predictor.3} parent=89 // pred_check
          %p622 = pneg %p193
        $region92: #{dense_predictor.3} parent=89 // pred_check_branch
          %624 = sbr.rel (%p622) target = $region94
        $region93: #{dense_predictor.3} parent=89 // pred_region
          %p625 = scmp.lt.s32.totalorder %s23, 1
          %s626 = scalar_select %p625, %s23, 1
          %p627 = scmp.lt.s32.totalorder %s24, 3
          %s628 = scalar_select %p627, %s24, 3
          %s629 = smul.addr %s626, 4
          %s630 = sadd.s32 %s628, %s629
          %s631 = smul.addr %s630, 4
          %s632 = scalar_lea.vmem %s6, %s631
        $region94: #{dense_predictor.3} parent=89 // pred_fallthru
          _
      $region90: #{dense_predictor.3} parent=5 // pred_fallthru
        _
    $region6: #{dense_predictor.3} parent=1 // loop_footer
      %s16 = sadd.s32 1, %s12
    $region7: #{dense_predictor.3} parent=1 // loop_footer_branch
      %11 = sbr.rel target = $region3
    $region8: #{dense_predictor.3} parent=1 // loop_exit
      _

// kernel: dense_predictor.2
$region0: #{dense_predictor.2}
  #allocation0 [shape = 'u32[]', space=smem, size = 0x4, offset = 0x4, fixed_abs, tag = 'smem constant byte address 0x4 - core index']
  #allocation1 [shape = 'u32[144,128]{1,0:T(1,128)}', space=vmem, size = 0x12000, scoped, tag = 'internal scratch']
  #allocation2 [shape = 'f32[2]{0:T(128)}', space=smem, size = 0x200, scoped, tag = 'scratch operand']
  %s0 = inlined_call_operand.vmem [shape: f32[2,3,512], index: 0, kind: input, shape index: {}]
  %s1 = inlined_call_operand.vmem [shape: f32[2,3,512], index: 1, kind: input, shape index: {}]
  %s2 = inlined_call_operand.vmem [shape: f32[64,3], index: 2, kind: input, shape index: {}]
  %s3 = inlined_call_operand.vmem [shape: f32[64,1], index: 3, kind: input, shape index: {}]
  %s4 = inlined_call_operand.vmem [shape: bf16[64,64], index: 4, kind: input, shape index: {}]
  %s5 = inlined_call_operand.vmem [shape: f32[64,1], index: 5, kind: input, shape index: {}]
  %s6 = inlined_call_operand.vmem [shape: bf16[64,128], index: 6, kind: input, shape index: {}]
  %s7 = inlined_call_operand.vmem [shape: f32[64,1], index: 7, kind: input, shape index: {}]
  %s8 = inlined_call_operand.vmem [shape: f32[2,64,512], index: 8, kind: output, shape index: {0}]
  %s9 = inlined_call_operand.vmem [shape: f32[2,2,128], index: 9, kind: output, shape index: {1}]
  %10 = xla_tuple %s8, %s9
  %s11 = sld [smem:[#allocation0]]
  $region115: #{dense_predictor.2} parent=0
    _
  %s13 = ssub.s32 1, %s11
  %s14 = scalar_select 0, %s13, %s11
  $region1: #{dense_predictor.2} parent=0
    #allocation3 [shape = 'u8[65536]{0}', space=vmem, size = 0x10000, scoped, tag = 'output window, operand 0']
    loop: start=0, step=1, limit=10
    $region2: #{dense_predictor.2} parent=1 // loop_pre_header
      _
    $region3: #{dense_predictor.2} parent=1 // loop_header
      %s16 = sphi 0, %s20
      %p17 = scmp.ge.s32.totalorder %s16, 10
      %s23 = sphi 0, %s35
      %s24 = sphi 0, %s31
      %s25 = sphi 0, %s23
      %s26 = sphi 0, %s24
      %s27 = sphi 0, %s25
      %s28 = sphi 0, %s26
      %s40 = sphi 0, %s42
      %s43 = sphi 0, %s40
      %s44 = sphi 0, %s43
      %s60 = sphi 0, %s44
      %s68 = sphi 0, %s70
      %s71 = sphi 0, %s68
      %s72 = sphi 0, %s71
      %s88 = sphi 0, %s72
      %s92 = sphi 0, %s92
      %s94 = sphi 0, %s92
      %s95 = sphi 0, %s94
      %s109 = sphi 0, %s95
      %s113 = sphi 0, %s113
      %s115 = sphi 0, %s113
      %s116 = sphi 0, %s115
      %s130 = sphi 0, %s116
      %s134 = sphi 0, %s134
      %s136 = sphi 0, %s134
      %s137 = sphi 0, %s136
      %s151 = sphi 0, %s137
      %s155 = sphi 0, %s155
      %s157 = sphi 0, %s155
      %s158 = sphi 0, %s157
      %s172 = sphi 0, %s158
      %s176 = sphi 0, %s176
      %s178 = sphi 0, %s176
      %s179 = sphi 0, %s178
      %s193 = sphi 0, %s179
      %s197 = sphi 0, %s197
      %s199 = sphi 0, %s197
      %s200 = sphi 0, %s199
      %s214 = sphi 0, %s200
      %s222 = sphi 0, %s224
      %s225 = sphi 0, %s222
      %s226 = sphi 0, %s225
      %s242 = sphi 0, %s226
      %s248 = sphi 0, %s250
      %s251 = sphi 0, %s248
      %s252 = sphi 0, %s251
      %s268 = sphi 0, %s252
    $region4: #{dense_predictor.2} parent=1 // loop_header_branch
      %19 = sbr.rel (%p17) target = $region8
    $region5: #{dense_predictor.2} parent=1 // loop_body
      %s21 = ssub.s32 %s16, 1
      %s22 = ssub.s32 %s16, 2
      %s29 = sadd.s32 1, %s24
      %p30 = scmp.ge.s32.totalorder %s29, 4
      %s31 = scalar_select %p30, 0, %s29
      %s32 = sadd.s32 1, %s23
      %s33 = scalar_select %p30, %s32, %s23
      %p34 = scmp.ge.s32.totalorder %s33, 2
      %s35 = scalar_select %p34, 0, %s33
      %s36 = ssub.s32 %s23, %s35
      %s37 = ssub.s32 %s24, %s31
      %s38 = sor.u32 %s36, %s37
      %p39 = scmp.eq.s32.totalorder %s38, 0
      %s41 = sadd.s32 %s40, 1
      %s42 = scalar_select %p39, %s40, %s41
      %p45 = pneg %p39
      %p46 = scmp.eq.s32.totalorder %s16, 7
      %p47 = por %p45, %p46
      %p48 = scmp.ne.s32.totalorder %s40, %s43
      %p49 = scmp.eq.s32.totalorder %s16, 0
      %p50 = por %p48, %p49
      %p51 = scmp.ne.s32.totalorder %s40, %s43
      %p52 = scmp.eq.s32.totalorder %s21, 7
      %p53 = por %p51, %p52
      %p54 = scmp.ne.s32.totalorder %s43, %s44
      %p55 = scmp.eq.s32.totalorder %s21, 0
      %p56 = por %p54, %p55
      %p57 = scmp.ne.s32.totalorder %s43, %s44
      %p58 = scmp.eq.s32.totalorder %s22, 7
      %p59 = por %p57, %p58
      %p61 = scmp.ne.s32.totalorder %s44, %s60
      %p62 = scmp.eq.s32.totalorder %s22, 0
      %p63 = por %p61, %p62
      %s64 = ssub.s32 %s23, %s35
      %s65 = ssub.s32 %s24, %s31
      %s66 = sor.u32 %s64, %s65
      %p67 = scmp.eq.s32.totalorder %s66, 0
      %s69 = sadd.s32 %s68, 1
      %s70 = scalar_select %p67, %s68, %s69
      %p73 = pneg %p67
      %p74 = scmp.eq.s32.totalorder %s16, 7
      %p75 = por %p73, %p74
      %p76 = scmp.ne.s32.totalorder %s68, %s71
      %p77 = scmp.eq.s32.totalorder %s16, 0
      %p78 = por %p76, %p77
      %p79 = scmp.ne.s32.totalorder %s68, %s71
      %p80 = scmp.eq.s32.totalorder %s21, 7
      %p81 = por %p79, %p80
      %p82 = scmp.ne.s32.totalorder %s71, %s72
      %p83 = scmp.eq.s32.totalorder %s21, 0
      %p84 = por %p82, %p83
      %p85 = scmp.ne.s32.totalorder %s71, %s72
      %p86 = scmp.eq.s32.totalorder %s22, 7
      %p87 = por %p85, %p86
      %p89 = scmp.ne.s32.totalorder %s72, %s88
      %p90 = scmp.eq.s32.totalorder %s22, 0
      %p91 = por %p89, %p90
      %s93 = sadd.s32 %s92, 1
      %p96 = scmp.eq.s32.totalorder %s16, 7
      %p97 = scmp.ne.s32.totalorder %s92, %s94
      %p98 = scmp.eq.s32.totalorder %s16, 0
      %p99 = por %p97, %p98
      %p100 = scmp.ne.s32.totalorder %s92, %s94
      %p101 = scmp.eq.s32.totalorder %s21, 7
      %p102 = por %p100, %p101
      %p103 = scmp.ne.s32.totalorder %s94, %s95
      %p104 = scmp.eq.s32.totalorder %s21, 0
      %p105 = por %p103, %p104
      %p106 = scmp.ne.s32.totalorder %s94, %s95
      %p107 = scmp.eq.s32.totalorder %s22, 7
      %p108 = por %p106, %p107
      %p110 = scmp.ne.s32.totalorder %s95, %s109
      %p111 = scmp.eq.s32.totalorder %s22, 0
      %p112 = por %p110, %p111
      %s114 = sadd.s32 %s113, 1
      %p117 = scmp.eq.s32.totalorder %s16, 7
      %p118 = scmp.ne.s32.totalorder %s113, %s115
      %p119 = scmp.eq.s32.totalorder %s16, 0
      %p120 = por %p118, %p119
      %p121 = scmp.ne.s32.totalorder %s113, %s115
      %p122 = scmp.eq.s32.totalorder %s21, 7
      %p123 = por %p121, %p122
      %p124 = scmp.ne.s32.totalorder %s115, %s116
      %p125 = scmp.eq.s32.totalorder %s21, 0
      %p126 = por %p124, %p125
      %p127 = scmp.ne.s32.totalorder %s115, %s116
      %p128 = scmp.eq.s32.totalorder %s22, 7
      %p129 = por %p127, %p128
      %p131 = scmp.ne.s32.totalorder %s116, %s130
      %p132 = scmp.eq.s32.totalorder %s22, 0
      %p133 = por %p131, %p132
      %s135 = sadd.s32 %s134, 1
      %p138 = scmp.eq.s32.totalorder %s16, 7
      %p139 = scmp.ne.s32.totalorder %s134, %s136
      %p140 = scmp.eq.s32.totalorder %s16, 0
      %p141 = por %p139, %p140
      %p142 = scmp.ne.s32.totalorder %s134, %s136
      %p143 = scmp.eq.s32.totalorder %s21, 7
      %p144 = por %p142, %p143
      %p145 = scmp.ne.s32.totalorder %s136, %s137
      %p146 = scmp.eq.s32.totalorder %s21, 0
      %p147 = por %p145, %p146
      %p148 = scmp.ne.s32.totalorder %s136, %s137
      %p149 = scmp.eq.s32.totalorder %s22, 7
      %p150 = por %p148, %p149
      %p152 = scmp.ne.s32.totalorder %s137, %s151
      %p153 = scmp.eq.s32.totalorder %s22, 0
      %p154 = por %p152, %p153
      %s156 = sadd.s32 %s155, 1
      %p159 = scmp.eq.s32.totalorder %s16, 7
      %p160 = scmp.ne.s32.totalorder %s155, %s157
      %p161 = scmp.eq.s32.totalorder %s16, 0
      %p162 = por %p160, %p161
      %p163 = scmp.ne.s32.totalorder %s155, %s157
      %p164 = scmp.eq.s32.totalorder %s21, 7
      %p165 = por %p163, %p164
      %p166 = scmp.ne.s32.totalorder %s157, %s158
      %p167 = scmp.eq.s32.totalorder %s21, 0
      %p168 = por %p166, %p167
      %p169 = scmp.ne.s32.totalorder %s157, %s158
      %p170 = scmp.eq.s32.totalorder %s22, 7
      %p171 = por %p169, %p170
      %p173 = scmp.ne.s32.totalorder %s158, %s172
      %p174 = scmp.eq.s32.totalorder %s22, 0
      %p175 = por %p173, %p174
      %s177 = sadd.s32 %s176, 1
      %p180 = scmp.eq.s32.totalorder %s16, 7
      %p181 = scmp.ne.s32.totalorder %s176, %s178
      %p182 = scmp.eq.s32.totalorder %s16, 0
      %p183 = por %p181, %p182
      %p184 = scmp.ne.s32.totalorder %s176, %s178
      %p185 = scmp.eq.s32.totalorder %s21, 7
      %p186 = por %p184, %p185
      %p187 = scmp.ne.s32.totalorder %s178, %s179
      %p188 = scmp.eq.s32.totalorder %s21, 0
      %p189 = por %p187, %p188
      %p190 = scmp.ne.s32.totalorder %s178, %s179
      %p191 = scmp.eq.s32.totalorder %s22, 7
      %p192 = por %p190, %p191
      %p194 = scmp.ne.s32.totalorder %s179, %s193
      %p195 = scmp.eq.s32.totalorder %s22, 0
      %p196 = por %p194, %p195
      %s198 = sadd.s32 %s197, 1
      %p201 = scmp.eq.s32.totalorder %s16, 7
      %p202 = scmp.ne.s32.totalorder %s197, %s199
      %p203 = scmp.eq.s32.totalorder %s16, 0
      %p204 = por %p202, %p203
      %p205 = scmp.ne.s32.totalorder %s197, %s199
      %p206 = scmp.eq.s32.totalorder %s21, 7
      %p207 = por %p205, %p206
      %p208 = scmp.ne.s32.totalorder %s199, %s200
      %p209 = scmp.eq.s32.totalorder %s21, 0
      %p210 = por %p208, %p209
      %p211 = scmp.ne.s32.totalorder %s199, %s200
      %p212 = scmp.eq.s32.totalorder %s22, 7
      %p213 = por %p211, %p212
      %p215 = scmp.ne.s32.totalorder %s200, %s214
      %p216 = scmp.eq.s32.totalorder %s22, 0
      %p217 = por %p215, %p216
      %s218 = ssub.s32 %s23, %s35
      %s219 = ssub.s32 %s24, %s31
      %s220 = sor.u32 %s218, %s219
      %p221 = scmp.eq.s32.totalorder %s220, 0
      %s223 = sadd.s32 %s222, 1
      %s224 = scalar_select %p221, %s222, %s223
      %p227 = pneg %p221
      %p228 = scmp.eq.s32.totalorder %s16, 7
      %p229 = por %p227, %p228
      %p230 = scmp.ne.s32.totalorder %s222, %s225
      %p231 = scmp.eq.s32.totalorder %s16, 0
      %p232 = por %p230, %p231
      %p233 = scmp.ne.s32.totalorder %s222, %s225
      %p234 = scmp.eq.s32.totalorder %s21, 7
      %p235 = por %p233, %p234
      %p236 = scmp.ne.s32.totalorder %s225, %s226
      %p237 = scmp.eq.s32.totalorder %s21, 0
      %p238 = por %p236, %p237
      %p239 = scmp.ne.s32.totalorder %s225, %s226
      %p240 = scmp.eq.s32.totalorder %s22, 7
      %p241 = por %p239, %p240
      %p243 = scmp.ne.s32.totalorder %s226, %s242
      %p244 = scmp.eq.s32.totalorder %s22, 0
      %p245 = por %p243, %p244
      %s246 = ssub.s32 %s23, %s35
      %p247 = scmp.eq.s32.totalorder %s246, 0
      %s249 = sadd.s32 %s248, 1
      %s250 = scalar_select %p247, %s248, %s249
      %p253 = pneg %p247
      %p254 = scmp.eq.s32.totalorder %s16, 7
      %p255 = por %p253, %p254
      %p256 = scmp.ne.s32.totalorder %s248, %s251
      %p257 = scmp.eq.s32.totalorder %s16, 0
      %p258 = por %p256, %p257
      %p259 = scmp.ne.s32.totalorder %s248, %s251
      %p260 = scmp.eq.s32.totalorder %s21, 7
      %p261 = por %p259, %p260
      %p262 = scmp.ne.s32.totalorder %s251, %s252
      %p263 = scmp.eq.s32.totalorder %s21, 0
      %p264 = por %p262, %p263
      %p265 = scmp.ne.s32.totalorder %s251, %s252
      %p266 = scmp.eq.s32.totalorder %s22, 7
      %p267 = por %p265, %p266
      %p269 = scmp.ne.s32.totalorder %s252, %s268
      %p270 = scmp.eq.s32.totalorder %s22, 0
      %p271 = por %p269, %p270
      %p272 = scmp.le.s32.totalorder 1, %s16
      %p273 = scmp.lt.s32.totalorder %s16, 9
      %p274 = pnand %p272, %p273
      %p275 = pneg %p274
      // Predicated region
      $region9: #{dense_predictor.2} parent=5 // pred_check
        _
      $region10: #{dense_predictor.2} parent=5 // pred_check_branch
        %277 = sbr.rel (%p274) target = $region12
      $region11: #{dense_predictor.2} parent=5 // pred_region
        %s278 = ssub.s32 %s16, 1
        // Predicated region
        $region13: #{dense_predictor.2} parent=11 // pred_check
          %p279 = pneg %p105
        $region14: #{dense_predictor.2} parent=11 // pred_check_branch
          %281 = sbr.rel (%p279) target = $region16
        $region15: #{dense_predictor.2} parent=11 // pred_region
          _
        $region16: #{dense_predictor.2} parent=11 // pred_fallthru
          _
        // Predicated region
        $region17: #{dense_predictor.2} parent=11 // pred_check
          %p282 = pneg %p126
        $region18: #{dense_predictor.2} parent=11 // pred_check_branch
          %284 = sbr.rel (%p282) target = $region20
        $region19: #{dense_predictor.2} parent=11 // pred_region
          _
        $region20: #{dense_predictor.2} parent=11 // pred_fallthru
          _
        // Predicated region
        $region21: #{dense_predictor.2} parent=11 // pred_check
          %p285 = pneg %p147
        $region22: #{dense_predictor.2} parent=11 // pred_check_branch
          %287 = sbr.rel (%p285) target = $region24
        $region23: #{dense_predictor.2} parent=11 // pred_region
          _
        $region24: #{dense_predictor.2} parent=11 // pred_fallthru
          _
        // Predicated region
        $region25: #{dense_predictor.2} parent=11 // pred_check
          %p288 = pneg %p168
        $region26: #{dense_predictor.2} parent=11 // pred_check_branch
          %290 = sbr.rel (%p288) target = $region28
        $region27: #{dense_predictor.2} parent=11 // pred_region
          _
        $region28: #{dense_predictor.2} parent=11 // pred_fallthru
          _
        // Predicated region
        $region29: #{dense_predictor.2} parent=11 // pred_check
          %p291 = pneg %p189
        $region30: #{dense_predictor.2} parent=11 // pred_check_branch
          %293 = sbr.rel (%p291) target = $region32
        $region31: #{dense_predictor.2} parent=11 // pred_region
          _
        $region32: #{dense_predictor.2} parent=11 // pred_fallthru
          _
        // Predicated region
        $region33: #{dense_predictor.2} parent=11 // pred_check
          %p294 = pneg %p210
        $region34: #{dense_predictor.2} parent=11 // pred_check_branch
          %296 = sbr.rel (%p294) target = $region36
        $region35: #{dense_predictor.2} parent=11 // pred_region
          _
        $region36: #{dense_predictor.2} parent=11 // pred_fallthru
          _
      $region12: #{dense_predictor.2} parent=5 // pred_fallthru
        _
      %p297 = scmp.lt.s32.totalorder %s16, 8
      // Predicated region
      $region37: #{dense_predictor.2} parent=5 // pred_check
        %p298 = pneg %p297
      $region38: #{dense_predictor.2} parent=5 // pred_check_branch
        %300 = sbr.rel (%p298) target = $region40
      $region39: #{dense_predictor.2} parent=5 // pred_region
        // Predicated region
        $region41: #{dense_predictor.2} parent=39 // pred_check
          %p301 = pneg %p50
        $region42: #{dense_predictor.2} parent=39 // pred_check_branch
          %303 = sbr.rel (%p301) target = $region44
        $region43: #{dense_predictor.2} parent=39 // pred_region
          %p304 = scmp.lt.s32.totalorder %s23, 1
          %s305 = scalar_select %p304, %s23, 1
          %p306 = scmp.lt.s32.totalorder %s24, 3
          %s307 = scalar_select %p306, %s24, 3
          %s308 = smul.addr %s305, 4
          %s309 = sadd.s32 %s307, %s308
          %s310 = smul.addr %s309, 4
          %s311 = scalar_lea.vmem %s0, %s310
        $region44: #{dense_predictor.2} parent=39 // pred_fallthru
          _
        // Predicated region
        $region45: #{dense_predictor.2} parent=39 // pred_check
          %p312 = pneg %p78
        $region46: #{dense_predictor.2} parent=39 // pred_check_branch
          %314 = sbr.rel (%p312) target = $region48
        $region47: #{dense_predictor.2} parent=39 // pred_region
          %p315 = scmp.lt.s32.totalorder %s23, 1
          %s316 = scalar_select %p315, %s23, 1
          %p317 = scmp.lt.s32.totalorder %s24, 3
          %s318 = scalar_select %p317, %s24, 3
          %s319 = smul.addr %s316, 4
          %s320 = sadd.s32 %s318, %s319
          %s321 = smul.addr %s320, 4
          %s322 = scalar_lea.vmem %s1, %s321
        $region48: #{dense_predictor.2} parent=39 // pred_fallthru
          _
      $region40: #{dense_predictor.2} parent=5 // pred_fallthru
        _
      %p323 = scmp.le.s32.totalorder 1, %s16
      %p324 = scmp.lt.s32.totalorder %s16, 9
      %p325 = pnand %p323, %p324
      %p326 = pneg %p325
      // Predicated region
      $region49: #{dense_predictor.2} parent=5 // pred_check
        _
      $region50: #{dense_predictor.2} parent=5 // pred_check_branch
        %328 = sbr.rel (%p325) target = $region52
      $region51: #{dense_predictor.2} parent=5 // pred_region
        %s329 = ssub.s32 %s16, 1
        %p330 = scmp.lt.s32.totalorder %s25, 1
        %s331 = scalar_select %p330, %s25, 1
        %p332 = scmp.lt.s32.totalorder %s26, 3
        %s333 = scalar_select %p332, %s26, 3
        %s334 = smul.addr %s331, 4
        %s335 = sadd.s32 %s333, %s334
        %s336 = smul.addr %s335, 4
        %s337 = scalar_lea.vmem %s0, %s336
        %p338 = pneg %p56
        %p339 = pneg %p53
        %p340 = scmp.lt.s32.totalorder %s25, 1
        %s341 = scalar_select %p340, %s25, 1
        %p342 = scmp.lt.s32.totalorder %s26, 3
        %s343 = scalar_select %p342, %s26, 3
        %s344 = smul.addr %s341, 4
        %s345 = sadd.s32 %s343, %s344
        %s346 = smul.addr %s345, 4
        %s347 = scalar_lea.vmem %s1, %s346
        %p348 = pneg %p84
        %p349 = pneg %p81
        %p350 = pneg %p105
        %p351 = pneg %p102
        %p352 = pneg %p126
        %p353 = pneg %p123
        %p354 = pneg %p147
        %p355 = pneg %p144
        %p356 = pneg %p168
        %p357 = pneg %p165
        %p358 = pneg %p189
        %p359 = pneg %p186
        %p360 = pneg %p210
        %p361 = pneg %p207
        %p362 = pneg %p238
        %p363 = pneg %p235
        %s364 = sand.u32 %s225, 1
        %s365 = sand.u32 %s225, 1
        %s366 = smul.addr %s365, 64
        %s367 = scalar_lea.vmem [#allocation3], %s366
        %p368 = pneg %p264
        %p369 = pneg %p261
        %p370 = scmp.lt.s32.totalorder %s25, 1
        %s371 = scalar_select %p370, %s25, 1
        %s372 = smul.addr %s371, 2
        %s373 = scalar_lea.vmem %s9, %s372
        %p374 = scmp.lt.s32.totalorder %s25, 1
        %s375 = scalar_select %p374, %s25, 1
        %p376 = scmp.lt.s32.totalorder %s26, 3
        %s377 = scalar_select %p376, %s26, 3
        %s378 = smul.addr %s375, 4
        %s379 = sadd.s32 %s377, %s378
        %s380 = smul.addr %s379, 4
        %s381 = scalar_lea.vmem %s0, %s380
        %p382 = scmp.lt.s32.totalorder %s25, 1
        %s383 = scalar_select %p382, %s25, 1
        %p384 = scmp.lt.s32.totalorder %s26, 3
        %s385 = scalar_select %p384, %s26, 3
        %s386 = smul.addr %s383, 4
        %s387 = sadd.s32 %s385, %s386
        %s388 = smul.addr %s387, 4
        %s389 = scalar_lea.vmem %s1, %s388
        %p390 = scmp.lt.s32.totalorder %s25, 1
        %s391 = scalar_select %p390, %s25, 1
        %s392 = smul.addr %s391, 2
        %s393 = scalar_lea.vmem %s9, %s392
        %v395 = vld [vmem:[%s381] sm:$0x7]
        %v396 = vld [vmem:[%s389] sm:$0x7]
        %v397 = vld [vmem:[%s2] sm:$0xff]
        %v398 = vld [vmem:[%s2 + $0x8] sm:$0xff]
        %v399 = vld [vmem:[%s2 + $0x10] sm:$0xff]
        %v400 = vld [vmem:[%s2 + $0x18] sm:$0xff]
        %v401 = vld [vmem:[%s2 + $0x20] sm:$0xff]
        %v402 = vld [vmem:[%s2 + $0x28] sm:$0xff]
        %v403 = vld [vmem:[%s2 + $0x30] sm:$0xff]
        %v404 = vld [vmem:[%s2 + $0x38] sm:$0xff]
        %406 = vset.pattern.permute.xlu0 0
        %407 = vperm.xlu0 %406, %v397
        %v408 = vpop.permute.xlu0 %407
        %411 = vset.pattern.permute.xlu0 0
        %412 = vperm.xlu0 %411, %v398
        %v413 = vpop.permute.xlu0 %412
        %416 = vset.pattern.permute.xlu0 0
        %417 = vperm.xlu0 %416, %v399
        %v418 = vpop.permute.xlu0 %417
        %421 = vset.pattern.permute.xlu0 0
        %422 = vperm.xlu0 %421, %v400
        %v423 = vpop.permute.xlu0 %422
        %426 = vset.pattern.permute.xlu0 0
        %427 = vperm.xlu0 %426, %v401
        %v428 = vpop.permute.xlu0 %427
        %431 = vset.pattern.permute.xlu0 0
        %432 = vperm.xlu0 %431, %v402
        %v433 = vpop.permute.xlu0 %432
        %436 = vset.pattern.permute.xlu0 0
        %437 = vperm.xlu0 %436, %v403
        %v438 = vpop.permute.xlu0 %437
        %441 = vset.pattern.permute.xlu0 0
        %442 = vperm.xlu0 %441, %v404
        %v443 = vpop.permute.xlu0 %442
        %v445 = vlaneseq
        %v446 = vshrl.u32 %v445, 7
        %v447 = vsub.s32 0, %v446
        %v448 = vrot.slane %v395, %v447
        %v449 = vlaneseq
        %v450 = vshrl.u32 %v449, 7
        %v451 = vsub.s32 0, %v450
        %v452 = vrot.slane %v396, %v451
        %v453 = vmul.f32 %v408, %v448
        %v454 = vmul.f32 %v408, %v452
        %v455 = vmul.f32 %v413, %v448
        %v456 = vmul.f32 %v413, %v452
        %v457 = vmul.f32 %v418, %v448
        %v458 = vmul.f32 %v418, %v452
        %v459 = vmul.f32 %v423, %v448
        %v460 = vmul.f32 %v423, %v452
        %v461 = vmul.f32 %v428, %v448
        %v462 = vmul.f32 %v428, %v452
        %v463 = vmul.f32 %v433, %v448
        %v464 = vmul.f32 %v433, %v452
        %v465 = vmul.f32 %v438, %v448
        %v466 = vmul.f32 %v438, %v452
        %v467 = vmul.f32 %v443, %v448
        %v468 = vmul.f32 %v443, %v452
        %469 = vset.pattern.permute.xlu0 1
        %470 = vperm.xlu0 %469, %v397
        %v471 = vpop.permute.xlu0 %470
        %473 = vset.pattern.permute.xlu0 1
        %474 = vperm.xlu0 %473, %v398
        %v475 = vpop.permute.xlu0 %474
        %477 = vset.pattern.permute.xlu0 1
        %478 = vperm.xlu0 %477, %v399
        %v479 = vpop.permute.xlu0 %478
        %481 = vset.pattern.permute.xlu0 1
        %482 = vperm.xlu0 %481, %v400
        %v483 = vpop.permute.xlu0 %482
        %485 = vset.pattern.permute.xlu0 1
        %486 = vperm.xlu0 %485, %v401
        %v487 = vpop.permute.xlu0 %486
        %489 = vset.pattern.permute.xlu0 1
        %490 = vperm.xlu0 %489, %v402
        %v491 = vpop.permute.xlu0 %490
        %493 = vset.pattern.permute.xlu0 1
        %494 = vperm.xlu0 %493, %v403
        %v495 = vpop.permute.xlu0 %494
        %497 = vset.pattern.permute.xlu0 1
        %498 = vperm.xlu0 %497, %v404
        %v499 = vpop.permute.xlu0 %498
        %v501 = vlaneseq
        %v502 = vshrl.u32 %v501, 7
        %v503 = vsub.s32 1, %v502
        %v504 = vrot.slane %v395, %v503
        %v505 = vlaneseq
        %v506 = vshrl.u32 %v505, 7
        %v507 = vsub.s32 1, %v506
        %v508 = vrot.slane %v396, %v507
        %v509 = vmul.f32 %v471, %v504
        %v510 = vmul.f32 %v471, %v508
        %v511 = vmul.f32 %v475, %v504
        %v512 = vmul.f32 %v475, %v508
        %v513 = vmul.f32 %v479, %v504
        %v514 = vmul.f32 %v479, %v508
        %v515 = vmul.f32 %v483, %v504
        %v516 = vmul.f32 %v483, %v508
        %v517 = vmul.f32 %v487, %v504
        %v518 = vmul.f32 %v487, %v508
        %v519 = vmul.f32 %v491, %v504
        %v520 = vmul.f32 %v491, %v508
        %v521 = vmul.f32 %v495, %v504
        %v522 = vmul.f32 %v495, %v508
        %v523 = vmul.f32 %v499, %v504
        %v524 = vmul.f32 %v499, %v508
        %v525 = vadd.f32 %v453, %v509
        %v526 = vadd.f32 %v454, %v510
        %v527 = vadd.f32 %v455, %v511
        %v528 = vadd.f32 %v456, %v512
        %v529 = vadd.f32 %v457, %v513
        %v530 = vadd.f32 %v458, %v514
        %v531 = vadd.f32 %v459, %v515
        %v532 = vadd.f32 %v460, %v516
        %v533 = vadd.f32 %v461, %v517
        %v534 = vadd.f32 %v462, %v518
        %v535 = vadd.f32 %v463, %v519
        %v536 = vadd.f32 %v464, %v520
        %v537 = vadd.f32 %v465, %v521
        %v538 = vadd.f32 %v466, %v522
        %v539 = vadd.f32 %v467, %v523
        %v540 = vadd.f32 %v468, %v524
        %541 = vset.pattern.permute.xlu0 2
        %542 = vperm.xlu0 %541, %v397
        %v543 = vpop.permute.xlu0 %542
        %545 = vset.pattern.permute.xlu0 2
        %546 = vperm.xlu0 %545, %v398
        %v547 = vpop.permute.xlu0 %546
        %549 = vset.pattern.permute.xlu0 2
        %550 = vperm.xlu0 %549, %v399
        %v551 = vpop.permute.xlu0 %550
        %553 = vset.pattern.permute.xlu0 2
        %554 = vperm.xlu0 %553, %v400
        %v555 = vpop.permute.xlu0 %554
        %557 = vset.pattern.permute.xlu0 2
        %558 = vperm.xlu0 %557, %v401
        %v559 = vpop.permute.xlu0 %558
        %561 = vset.pattern.permute.xlu0 2
        %562 = vperm.xlu0 %561, %v402
        %v563 = vpop.permute.xlu0 %562
        %565 = vset.pattern.permute.xlu0 2
        %566 = vperm.xlu0 %565, %v403
        %v567 = vpop.permute.xlu0 %566
        %569 = vset.pattern.permute.xlu0 2
        %570 = vperm.xlu0 %569, %v404
        %v571 = vpop.permute.xlu0 %570
        %v573 = vlaneseq
        %v574 = vshrl.u32 %v573, 7
        %v575 = vsub.s32 2, %v574
        %v576 = vrot.slane %v395, %v575
        %v577 = vlaneseq
        %v578 = vshrl.u32 %v577, 7
        %v579 = vsub.s32 2, %v578
        %v580 = vrot.slane %v396, %v579
        %v581 = vmul.f32 %v543, %v576
        %v582 = vmul.f32 %v543, %v580
        %v583 = vmul.f32 %v547, %v576
        %v584 = vmul.f32 %v547, %v580
        %v585 = vmul.f32 %v551, %v576
        %v586 = vmul.f32 %v551, %v580
        %v587 = vmul.f32 %v555, %v576
        %v588 = vmul.f32 %v555, %v580
        %v589 = vmul.f32 %v559, %v576
        %v590 = vmul.f32 %v559, %v580
        %v591 = vmul.f32 %v563, %v576
        %v592 = vmul.f32 %v563, %v580
        %v593 = vmul.f32 %v567, %v576
        %v594 = vmul.f32 %v567, %v580
        %v595 = vmul.f32 %v571, %v576
        %v596 = vmul.f32 %v571, %v580
        %v597 = vadd.f32 %v525, %v581
        %v598 = vadd.f32 %v526, %v582
        %v599 = vadd.f32 %v527, %v583
        %v600 = vadd.f32 %v528, %v584
        %v601 = vadd.f32 %v529, %v585
        %v602 = vadd.f32 %v530, %v586
        %v603 = vadd.f32 %v531, %v587
        %v604 = vadd.f32 %v532, %v588
        %v605 = vadd.f32 %v533, %v589
        %v606 = vadd.f32 %v534, %v590
        %v607 = vadd.f32 %v535, %v591
        %v608 = vadd.f32 %v536, %v592
        %v609 = vadd.f32 %v537, %v593
        %v610 = vadd.f32 %v538, %v594
        %v611 = vadd.f32 %v539, %v595
        %v612 = vadd.f32 %v540, %v596
        %v613 = vld [vmem:[%s3] sm:$0xff]
        %v614 = vld [vmem:[%s3 + $0x8] sm:$0xff]
        %v615 = vld [vmem:[%s3 + $0x10] sm:$0xff]
        %v616 = vld [vmem:[%s3 + $0x18] sm:$0xff]
        %v617 = vld [vmem:[%s3 + $0x20] sm:$0xff]
        %v618 = vld [vmem:[%s3 + $0x28] sm:$0xff]
        %v619 = vld [vmem:[%s3 + $0x30] sm:$0xff]
        %v620 = vld [vmem:[%s3 + $0x38] sm:$0xff]
        %622 = vset.pattern.permute.xlu0 0
        %623 = vperm.xlu0 %622, %v613
        %v624 = vpop.permute.xlu0 %623
        %627 = vset.pattern.permute.xlu0 0
        %628 = vperm.xlu0 %627, %v614
        %v629 = vpop.permute.xlu0 %628
        %632 = vset.pattern.permute.xlu0 0
        %633 = vperm.xlu0 %632, %v615
        %v634 = vpop.permute.xlu0 %633
        %637 = vset.pattern.permute.xlu0 0
        %638 = vperm.xlu0 %637, %v616
        %v639 = vpop.permute.xlu0 %638
        %642 = vset.pattern.permute.xlu0 0
        %643 = vperm.xlu0 %642, %v617
        %v644 = vpop.permute.xlu0 %643
        %647 = vset.pattern.permute.xlu0 0
        %648 = vperm.xlu0 %647, %v618
        %v649 = vpop.permute.xlu0 %648
        %652 = vset.pattern.permute.xlu0 0
        %653 = vperm.xlu0 %652, %v619
        %v654 = vpop.permute.xlu0 %653
        %657 = vset.pattern.permute.xlu0 0
        %658 = vperm.xlu0 %657, %v620
        %v659 = vpop.permute.xlu0 %658
        %v661 = vadd.f32 %v597, %v624
        %v662 = vadd.f32 %v598, %v624
        %v663 = vadd.f32 %v599, %v629
        %v664 = vadd.f32 %v600, %v629
        %v665 = vadd.f32 %v601, %v634
        %v666 = vadd.f32 %v602, %v634
        %v667 = vadd.f32 %v603, %v639
        %v668 = vadd.f32 %v604, %v639
        %v669 = vadd.f32 %v605, %v644
        %v670 = vadd.f32 %v606, %v644
        %v671 = vadd.f32 %v607, %v649
        %v672 = vadd.f32 %v608, %v649
        %v673 = vadd.f32 %v609, %v654
        %v674 = vadd.f32 %v610, %v654
        %v675 = vadd.f32 %v611, %v659
        %v676 = vadd.f32 %v612, %v659
        %v677 = vmax.f32 %v661, 0.0
        %v678 = vmax.f32 %v662, 0.0
        %v679 = vmax.f32 %v663, 0.0
        %v680 = vmax.f32 %v664, 0.0
        %v681 = vmax.f32 %v665, 0.0
        %v682 = vmax.f32 %v666, 0.0
        %v683 = vmax.f32 %v667, 0.0
        %v684 = vmax.f32 %v668, 0.0
        %v685 = vmax.f32 %v669, 0.0
        %v686 = vmax.f32 %v670, 0.0
        %v687 = vmax.f32 %v671, 0.0
        %v688 = vmax.f32 %v672, 0.0
        %v689 = vmax.f32 %v673, 0.0
        %v690 = vmax.f32 %v674, 0.0
        %v691 = vmax.f32 %v675, 0.0
        %v692 = vmax.f32 %v676, 0.0
        %v693 = vld [vmem:[%s4] sm:$0xf]
        %v694 = vld [vmem:[%s4 + $0x4] sm:$0xf]
        %v695 = vld [vmem:[%s4 + $0x8] sm:$0xf]
        %v696 = vld [vmem:[%s4 + $0xc] sm:$0xf]
        %v697 = vld [vmem:[%s4 + $0x10] sm:$0xf]
        %v698 = vld [vmem:[%s4 + $0x14] sm:$0xf]
        %v699 = vld [vmem:[%s4 + $0x18] sm:$0xf]
        %v700 = vld [vmem:[%s4 + $0x1c] sm:$0xf]
        %v701 = vpack.c.bf16 %v679, %v677
        %v702 = vpack.c.bf16 %v680, %v678
        %v703 = vpack.c.bf16 %v683, %v681
        %v704 = vpack.c.bf16 %v684, %v682
        %v705 = vpack.c.bf16 %v687, %v685
        %v706 = vpack.c.bf16 %v688, %v686
        %v707 = vpack.c.bf16 %v691, %v689
        %v708 = vpack.c.bf16 %v692, %v690
        %v709 = vld [vmem:[%s5] sm:$0xff]
        %v710 = vld [vmem:[%s5 + $0x8] sm:$0xff]
        %v711 = vld [vmem:[%s5 + $0x10] sm:$0xff]
        %v712 = vld [vmem:[%s5 + $0x18] sm:$0xff]
        %v713 = vld [vmem:[%s5 + $0x20] sm:$0xff]
        %v714 = vld [vmem:[%s5 + $0x28] sm:$0xff]
        %v715 = vld [vmem:[%s5 + $0x30] sm:$0xff]
        %v716 = vld [vmem:[%s5 + $0x38] sm:$0xff]
        %718 = vset.pattern.permute.xlu0 0
        %719 = vperm.xlu0 %718, %v709
        %v720 = vpop.permute.xlu0 %719
        %723 = vset.pattern.permute.xlu0 0
        %724 = vperm.xlu0 %723, %v710
        %v725 = vpop.permute.xlu0 %724
        %728 = vset.pattern.permute.xlu0 0
        %729 = vperm.xlu0 %728, %v711
        %v730 = vpop.permute.xlu0 %729
        %733 = vset.pattern.permute.xlu0 0
        %734 = vperm.xlu0 %733, %v712
        %v735 = vpop.permute.xlu0 %734
        %738 = vset.pattern.permute.xlu0 0
        %739 = vperm.xlu0 %738, %v713
        %v740 = vpop.permute.xlu0 %739
        %743 = vset.pattern.permute.xlu0 0
        %744 = vperm.xlu0 %743, %v714
        %v745 = vpop.permute.xlu0 %744
        %748 = vset.pattern.permute.xlu0 0
        %749 = vperm.xlu0 %748, %v715
        %v750 = vpop.permute.xlu0 %749
        %753 = vset.pattern.permute.xlu0 0
        %754 = vperm.xlu0 %753, %v716
        %v755 = vpop.permute.xlu0 %754
        %v765 = vunpack.c.l.b16 %v693
        %v766 = vunpack.c.l.b16 %v694
        %v767 = vunpack.c.l.b16 %v695
        %v768 = vunpack.c.l.b16 %v696
        %v769 = vunpack.c.l.b16 %v697
        %v770 = vunpack.c.l.b16 %v698
        %v771 = vunpack.c.l.b16 %v699
        %v772 = vunpack.c.l.b16 %v700
        %v773 = vpack.c.b16 %v766, %v765
        %v774 = vpack.c.b16 %v768, %v767
        %v775 = vpack.c.b16 %v770, %v769
        %v776 = vpack.c.b16 %v772, %v771
        %vm777 = vcmask 523264
        %v779 = vsel %vm777, %v773, 0
        %v782 = vsel %vm777, %v774, 0
        %v785 = vsel %vm777, %v775, 0
        %v788 = vsel %vm777, %v776, 0
        %790 = vmatprep.subr.bf16.mxu0 %v702
        %791 = vmatpush1.bf16.msra.mxu0 %v701
        %792 = vmatprep.subr.bf16.mxu0 %v704
        %793 = vmatpush1.bf16.msra.mxu0 %v703
        %794 = vmatprep.subr.bf16.mxu0 %v706
        %795 = vmatpush1.bf16.msra.mxu0 %v705
        %796 = vmatprep.subr.bf16.mxu0 %v708
        %797 = vmatpush1.bf16.msra.mxu0 %v707
        %798 = vmatprep.subr.bf16.mxu0 0
        %799 = vmatpush1.bf16.msra.mxu0 0
        %800 = vmatprep.subr.bf16.mxu0 0
        %801 = vmatpush1.bf16.msra.mxu0 0
        %802 = vmatprep.subr.bf16.mxu0 0
        %803 = vmatpush1.bf16.msra.mxu0 0
        %804 = vmatprep.subr.bf16.mxu0 0
        %805 = vmatpush1.bf16.msra.mxu0 0
        %806 = vmatprep.subr.bf16.mxu0 0
        %807 = vmatpush1.bf16.msra.mxu0 0
        %808 = vmatprep.subr.bf16.mxu0 0
        %809 = vmatpush1.bf16.msra.mxu0 0
        %810 = vmatprep.subr.bf16.mxu0 0
        %811 = vmatpush1.bf16.msra.mxu0 0
        %812 = vmatprep.subr.bf16.mxu0 0
        %813 = vmatpush1.bf16.msra.mxu0 0
        %814 = vmatprep.subr.bf16.mxu0 0
        %815 = vmatpush1.bf16.msra.mxu0 0
        %816 = vmatprep.subr.bf16.mxu0 0
        %817 = vmatpush1.bf16.msra.mxu0 0
        %818 = vmatprep.subr.bf16.mxu0 0
        %819 = vmatpush1.bf16.msra.mxu0 0
        %820 = vmatprep.subr.bf16.mxu0 0
        %821 = vmatpush1.bf16.msra.mxu0 0
        %822 = vmatprep.mubr.bf16.mxu0 0
        %823 = vmatmul.mubr.bf16.gmra.mrb[0].mxu0 %v779
        %v824 = vpop.f32.mrb[0].mxu0
        %v825 = vadd.f32 %v720, %v824
        %v826 = vpop.f32.mrb[0].mxu0
        %v827 = vadd.f32 %v720, %v826
        %v828 = vpop.f32.mrb[0].mxu0
        %v829 = vadd.f32 %v725, %v828
        %v830 = vpop.f32.mrb[0].mxu0
        %v831 = vadd.f32 %v725, %v830
        %832 = vmatprep.mubr.bf16.mxu0 0
        %833 = vmatmul.mubr.bf16.gmra.mrb[0].mxu0 %v782
        %v834 = vpop.f32.mrb[0].mxu0
        %v835 = vadd.f32 %v730, %v834
        %v836 = vpop.f32.mrb[0].mxu0
        %v837 = vadd.f32 %v730, %v836
        %v838 = vpop.f32.mrb[0].mxu0
        %v839 = vadd.f32 %v735, %v838
        %v840 = vpop.f32.mrb[0].mxu0
        %v841 = vadd.f32 %v735, %v840
        %842 = vmatprep.mubr.bf16.mxu0 0
        %843 = vmatmul.mubr.bf16.gmra.mrb[0].mxu0 %v785
        %v844 = vpop.f32.mrb[0].mxu0
        %v845 = vadd.f32 %v740, %v844
        %v846 = vpop.f32.mrb[0].mxu0
        %v847 = vadd.f32 %v740, %v846
        %v848 = vpop.f32.mrb[0].mxu0
        %v849 = vadd.f32 %v745, %v848
        %v850 = vpop.f32.mrb[0].mxu0
        %v851 = vadd.f32 %v745, %v850
        %852 = vmatprep.mubr.bf16.mxu0 0
        %853 = vmatmul.mubr.bf16.gmra.mrb[0].mxu0 %v788
        %v854 = vpop.f32.mrb[0].mxu0
        %v855 = vadd.f32 %v750, %v854
        %v856 = vpop.f32.mrb[0].mxu0
        %v857 = vadd.f32 %v750, %v856
        %v858 = vpop.f32.mrb[0].mxu0
        %v859 = vadd.f32 %v755, %v858
        %v860 = vpop.f32.mrb[0].mxu0
        %v861 = vadd.f32 %v755, %v860
        %862 = vdwg.mxu0
        %v863 = vmax.f32 %v825, 0.0
        %v864 = vmax.f32 %v827, 0.0
        %v865 = vmax.f32 %v829, 0.0
        %v866 = vmax.f32 %v831, 0.0
        %v867 = vmax.f32 %v835, 0.0
        %v868 = vmax.f32 %v837, 0.0
        %v869 = vmax.f32 %v839, 0.0
        %v870 = vmax.f32 %v841, 0.0
        %v871 = vmax.f32 %v845, 0.0
        %v872 = vmax.f32 %v847, 0.0
        %v873 = vmax.f32 %v849, 0.0
        %v874 = vmax.f32 %v851, 0.0
        %v875 = vmax.f32 %v855, 0.0
        %v876 = vmax.f32 %v857, 0.0
        %v877 = vmax.f32 %v859, 0.0
        %v878 = vmax.f32 %v861, 0.0
        %v879 = vpack.c.bf16 %v865, %v863
        %v880 = vpack.c.bf16 %v866, %v864
        %v881 = vpack.c.bf16 %v869, %v867
        %v882 = vpack.c.bf16 %v870, %v868
        %v883 = vpack.c.bf16 %v873, %v871
        %v884 = vpack.c.bf16 %v874, %v872
        %v885 = vpack.c.bf16 %v877, %v875
        %v886 = vpack.c.bf16 %v878, %v876
        %v887 = vld [vmem:[%s6] sm:$0xf]
        %v888 = vld [vmem:[%s6 + $0x4] sm:$0xf]
        %v889 = vld [vmem:[%s6 + $0x8] sm:$0xf]
        %v890 = vld [vmem:[%s6 + $0xc] sm:$0xf]
        %v891 = vld [vmem:[%s6 + $0x10] sm:$0xf]
        %v892 = vld [vmem:[%s6 + $0x14] sm:$0xf]
        %v893 = vld [vmem:[%s6 + $0x18] sm:$0xf]
        %v894 = vld [vmem:[%s6 + $0x1c] sm:$0xf]
        %v895 = vld [vmem:[%s7] sm:$0xff]
        %v896 = vld [vmem:[%s7 + $0x8] sm:$0xff]
        %v897 = vld [vmem:[%s7 + $0x10] sm:$0xff]
        %v898 = vld [vmem:[%s7 + $0x18] sm:$0xff]
        %v899 = vld [vmem:[%s7 + $0x20] sm:$0xff]
        %v900 = vld [vmem:[%s7 + $0x28] sm:$0xff]
        %v901 = vld [vmem:[%s7 + $0x30] sm:$0xff]
        %v902 = vld [vmem:[%s7 + $0x38] sm:$0xff]
        %904 = vset.pattern.permute.xlu0 0
        %905 = vperm.xlu0 %904, %v895
        %v906 = vpop.permute.xlu0 %905
        %909 = vset.pattern.permute.xlu0 0
        %910 = vperm.xlu0 %909, %v896
        %v911 = vpop.permute.xlu0 %910
        %914 = vset.pattern.permute.xlu0 0
        %915 = vperm.xlu0 %914, %v897
        %v916 = vpop.permute.xlu0 %915
        %919 = vset.pattern.permute.xlu0 0
        %920 = vperm.xlu0 %919, %v898
        %v921 = vpop.permute.xlu0 %920
        %924 = vset.pattern.permute.xlu0 0
        %925 = vperm.xlu0 %924, %v899
        %v926 = vpop.permute.xlu0 %925
        %929 = vset.pattern.permute.xlu0 0
        %930 = vperm.xlu0 %929, %v900
        %v931 = vpop.permute.xlu0 %930
        %934 = vset.pattern.permute.xlu0 0
        %935 = vperm.xlu0 %934, %v901
        %v936 = vpop.permute.xlu0 %935
        %939 = vset.pattern.permute.xlu0 0
        %940 = vperm.xlu0 %939, %v902
        %v941 = vpop.permute.xlu0 %940
        %v951 = vunpack.c.l.b16 %v887
        %v952 = vunpack.c.l.b16 %v888
        %v953 = vunpack.c.l.b16 %v889
        %v954 = vunpack.c.l.b16 %v890
        %v955 = vunpack.c.l.b16 %v891
        %v956 = vunpack.c.l.b16 %v892
        %v957 = vunpack.c.l.b16 %v893
        %v958 = vunpack.c.l.b16 %v894
        %v959 = vpack.c.b16 %v952, %v951
        %v960 = vpack.c.b16 %v954, %v953
        %v961 = vpack.c.b16 %v956, %v955
        %v962 = vpack.c.b16 %v958, %v957
        %967 = vmatprep.subr.bf16.mxu0 0
        %968 = vmatpush1.bf16.msra.mxu0 %v879
        %969 = vmatprep.subr.bf16.mxu0 0
        %970 = vmatpush1.bf16.msra.mxu0 %v881
        %971 = vmatprep.subr.bf16.mxu0 0
        %972 = vmatpush1.bf16.msra.mxu0 %v883
        %973 = vmatprep.subr.bf16.mxu0 0
        %974 = vmatpush1.bf16.msra.mxu0 %v885
        %975 = vmatprep.subr.bf16.mxu0 0
        %976 = vmatpush1.bf16.msra.mxu0 %v880
        %977 = vmatprep.subr.bf16.mxu0 0
        %978 = vmatpush1.bf16.msra.mxu0 %v882
        %979 = vmatprep.subr.bf16.mxu0 0
        %980 = vmatpush1.bf16.msra.mxu0 %v884
        %981 = vmatprep.subr.bf16.mxu0 0
        %982 = vmatpush1.bf16.msra.mxu0 %v886
        %983 = vmatprep.subr.bf16.mxu0 0
        %984 = vmatpush1.bf16.msra.mxu0 0
        %985 = vmatprep.subr.bf16.mxu0 0
        %986 = vmatpush1.bf16.msra.mxu0 0
        %987 = vmatprep.subr.bf16.mxu0 0
        %988 = vmatpush1.bf16.msra.mxu0 0
        %989 = vmatprep.subr.bf16.mxu0 0
        %990 = vmatpush1.bf16.msra.mxu0 0
        %991 = vmatprep.subr.bf16.mxu0 0
        %992 = vmatpush1.bf16.msra.mxu0 0
        %993 = vmatprep.subr.bf16.mxu0 0
        %994 = vmatpush1.bf16.msra.mxu0 0
        %995 = vmatprep.subr.bf16.mxu0 0
        %996 = vmatpush1.bf16.msra.mxu0 0
        %997 = vmatprep.subr.bf16.mxu0 0
        %998 = vmatpush1.bf16.msra.mxu0 0
        %999 = vmatprep.mubr.bf16.mxu0 0
        %1000 = vmatmul.mubr.bf16.gmra.mrb[0].mxu0 %v959
        %v1001 = vpop.f32.mrb[0].mxu0
        %v1002 = vadd.f32 %v906, %v1001
        %v1003 = vpop.f32.mrb[0].mxu0
        %v1004 = vpop.f32.mrb[0].mxu0
        %v1005 = vadd.f32 %v911, %v1004
        %v1006 = vpop.f32.mrb[0].mxu0
        %1007 = vmatprep.mubr.bf16.mxu0 0
        %1008 = vmatmul.mubr.bf16.gmra.mrb[0].mxu0 %v960
        %v1009 = vpop.f32.mrb[0].mxu0
        %v1010 = vadd.f32 %v916, %v1009
        %v1011 = vpop.f32.mrb[0].mxu0
        %v1012 = vpop.f32.mrb[0].mxu0
        %v1013 = vadd.f32 %v921, %v1012
        %v1014 = vpop.f32.mrb[0].mxu0
        %1015 = vmatprep.mubr.bf16.mxu0 0
        %1016 = vmatmul.mubr.bf16.gmra.mrb[0].mxu0 %v961
        %v1017 = vpop.f32.mrb[0].mxu0
        %v1018 = vadd.f32 %v926, %v1017
        %v1019 = vpop.f32.mrb[0].mxu0
        %v1020 = vpop.f32.mrb[0].mxu0
        %v1021 = vadd.f32 %v931, %v1020
        %v1022 = vpop.f32.mrb[0].mxu0
        %1023 = vmatprep.mubr.bf16.mxu0 0
        %1024 = vmatmul.mubr.bf16.gmra.mrb[0].mxu0 %v962
        %v1025 = vpop.f32.mrb[0].mxu0
        %v1026 = vadd.f32 %v936, %v1025
        %v1027 = vpop.f32.mrb[0].mxu0
        %v1028 = vpop.f32.mrb[0].mxu0
        %v1029 = vadd.f32 %v941, %v1028
        %v1030 = vpop.f32.mrb[0].mxu0
        %1031 = vdwg.mxu0
        %1032 = vst [vmem:[%s367] sm:$0xff] %v1002
        %1033 = vst [vmem:[%s367 + $0x8] sm:$0xff] %v1005
        %1034 = vst [vmem:[%s367 + $0x10] sm:$0xff] %v1010
        %1035 = vst [vmem:[%s367 + $0x18] sm:$0xff] %v1013
        %1036 = vst [vmem:[%s367 + $0x20] sm:$0xff] %v1018
        %1037 = vst [vmem:[%s367 + $0x28] sm:$0xff] %v1021
        %1038 = vst [vmem:[%s367 + $0x30] sm:$0xff] %v1026
        %1039 = vst [vmem:[%s367 + $0x38] sm:$0xff] %v1029
        %v1040 = vadd.f32 %v1002, %v1005
        %v1041 = vadd.f32 %v1040, %v1010
        %v1042 = vadd.f32 %v1041, %v1013
        %v1043 = vadd.f32 %v1042, %v1018
        %v1044 = vadd.f32 %v1043, %v1021
        %v1045 = vadd.f32 %v1044, %v1026
        %v1046 = vadd.f32 %v1045, %v1029
        %1047 = vadd.xlane.f32.xlu0 %v1046
        %v1048 = vpop.xlane.xlu0 %1047
        %v1049 = vrot.slane %v1048, 4
        %v1050 = vadd.f32 %v1048, %v1049
        %v1051 = vrot.slane %v1050, 2
        %v1052 = vadd.f32 %v1050, %v1051
        %v1053 = vrot.slane %v1052, 1
        %v1054 = vadd.f32 %v1052, %v1053
        %s1055 = vtos %v1054
        %v1056 = vrcp.pop 8192.0
        %s1057 = vtos %v1056
        %s1058 = smul.f32 %s1055, %s1057
        %v1059 = vstv %s1058
        %v1060 = vsub.f32 %v1002, %v1059
        %v1061 = vsub.f32 %v1005, %v1059
        %v1062 = vsub.f32 %v1010, %v1059
        %v1063 = vsub.f32 %v1013, %v1059
        %v1064 = vsub.f32 %v1018, %v1059
        %v1065 = vsub.f32 %v1021, %v1059
        %v1066 = vsub.f32 %v1026, %v1059
        %v1067 = vsub.f32 %v1029, %v1059
        %v1068 = vmul.f32 %v1060, %v1060
        %v1069 = vmul.f32 %v1061, %v1061
        %v1070 = vmul.f32 %v1062, %v1062
        %v1071 = vmul.f32 %v1063, %v1063
        %v1072 = vmul.f32 %v1064, %v1064
        %v1073 = vmul.f32 %v1065, %v1065
        %v1074 = vmul.f32 %v1066, %v1066
        %v1075 = vmul.f32 %v1067, %v1067
        %v1076 = vadd.f32 %v1068, %v1069
        %v1077 = vadd.f32 %v1076, %v1070
        %v1078 = vadd.f32 %v1077, %v1071
        %v1079 = vadd.f32 %v1078, %v1072
        %v1080 = vadd.f32 %v1079, %v1073
        %v1081 = vadd.f32 %v1080, %v1074
        %v1082 = vadd.f32 %v1081, %v1075
        %1083 = vadd.xlane.f32.xlu0 %v1082
        %v1084 = vpop.xlane.xlu0 %1083
        %v1085 = vrot.slane %v1084, 4
        %v1086 = vadd.f32 %v1084, %v1085
        %v1087 = vrot.slane %v1086, 2
        %v1088 = vadd.f32 %v1086, %v1087
        %v1089 = vrot.slane %v1088, 1
        %v1090 = vadd.f32 %v1088, %v1089
        %s1091 = vtos %v1090
        %p1092 = scmp.eq.s32.totalorder %s26, 0
        // Predicated region
        $region53: #{dense_predictor.2} parent=51 // pred_check
          %p1093 = pneg %p1092
        $region54: #{dense_predictor.2} parent=51 // pred_check_branch
          %1095 = sbr.rel (%p1093) target = $region56
        $region55: #{dense_predictor.2} parent=51 // pred_region
          %s1096 = scalar_lea.smem [#allocation2], 0
          %1097 = sst [smem:[%s1096]] %s1055
          %s1098 = scalar_lea.smem [#allocation2], 1
          %1099 = sst [smem:[%s1098]] %s1091
        $region56: #{dense_predictor.2} parent=51 // pred_fallthru
          _
        %p1100 = scmp.gt.s32.totalorder %s26, 0
        // Predicated region
        $region57: #{dense_predictor.2} parent=51 // pred_check
          %p1101 = pneg %p1100
        $region58: #{dense_predictor.2} parent=51 // pred_check_branch
          %1103 = sbr.rel (%p1101) target = $region60
        $region59: #{dense_predictor.2} parent=51 // pred_region
          %s1104 = scvt.s32.f32 %s26
          %s1105 = smul.f32 %s1104, 8192.0
          %s1106 = sld [smem:[#allocation2]]
          %s1107 = sld [smem:[#allocation2 + $0x1]]
          %v1108 = vstv %s1105
          %v1109 = vrcp.pop %v1108
          %s1110 = vtos %v1109
          %s1111 = smul.f32 %s1106, %s1110
          %s1112 = ssub.f32 %s1058, %s1111
          %s1113 = sadd.f32 %s1106, %s1055
          %s1114 = scalar_lea.smem [#allocation2], 0
          %1115 = sst [smem:[%s1114]] %s1113
          %s1116 = sadd.f32 %s1107, %s1091
          %s1117 = smul.f32 %s1112, %s1112
          %s1118 = smul.f32 %s1105, 8192.0
          %s1119 = smul.f32 %s1117, %s1118
          %s1120 = sadd.f32 %s1105, 8192.0
          %v1121 = vstv %s1120
          %v1122 = vrcp.pop %v1121
          %s1123 = vtos %v1122
          %s1124 = smul.f32 %s1119, %s1123
          %s1125 = sadd.f32 %s1116, %s1124
          %s1126 = scalar_lea.smem [#allocation2], 1
          %1127 = sst [smem:[%s1126]] %s1125
        $region60: #{dense_predictor.2} parent=51 // pred_fallthru
          _
        %s1128 = sadd.s32 %s26, 1
        %s1129 = scvt.s32.f32 %s1128
        %s1130 = smul.f32 %s1129, 8192.0
        %s1131 = sld [smem:[#allocation2]]
        %v1132 = vstv %s1130
        %v1133 = vrcp.pop %v1132
        %s1134 = vtos %v1133
        %s1135 = smul.f32 %s1131, %s1134
        %v1136 = vstv %s1135
        %s1137 = sld [smem:[#allocation2 + $0x1]]
        %v1138 = vstv %s1130
        %v1139 = vrcp.pop %v1138
        %s1140 = vtos %v1139
        %s1141 = smul.f32 %s1137, %s1140
        %v1142 = vstv %s1141
        %vm1143 = vcmask 1040384
        %v1144 = vsel %vm1143, %v1136, %v1142
        %1145 = vst [vmem:[%s393] sm:$0x3] %v1144
        %s1146 = sand.u32 %s225, 1
        %s1147 = sand.u32 %s225, 1
        %s1148 = smul.addr %s1147, 64
        %s1149 = scalar_lea.vmem [#allocation3], %s1148
        %p1150 = scmp.lt.s32.totalorder %s25, 1
        %s1151 = scalar_select %p1150, %s25, 1
        %s1152 = smul.addr %s1151, 2
        %s1153 = scalar_lea.vmem %s9, %s1152
        // Predicated region
        $region61: #{dense_predictor.2} parent=51 // pred_check
          %p1154 = pneg %p235
        $region62: #{dense_predictor.2} parent=51 // pred_check_branch
          %1156 = sbr.rel (%p1154) target = $region64
        $region63: #{dense_predictor.2} parent=51 // pred_region
          %s1157 = smul.addr %s25, 32
          %s1158 = sadd.s32 %s26, %s1157
          %s1159 = smul.addr %s1158, 8
          %s1160 = scalar_lea.vmem %s8, %s1159
          // Predicated region
          $region65: #{dense_predictor.2} parent=63 // pred_check
            _
          $region66: #{dense_predictor.2} parent=63 // pred_check_branch
            %1162 = sbr.rel (0) target = $region68
          $region67: #{dense_predictor.2} parent=63 // pred_region
            // Predicated region
            $region69: #{dense_predictor.2} parent=67 // pred_check
              _
            $region70: #{dense_predictor.2} parent=67 // pred_check_branch
              %1164 = sbr.rel (0) target = $region72
            $region71: #{dense_predictor.2} parent=67 // pred_region
              // Predicated region
              $region84: #{dense_predictor.2} parent=71 // pred_check
                _
              $region85: #{dense_predictor.2} parent=71 // pred_check_branch
                %1193 = sbr.rel (0) target = $region87
              $region86: #{dense_predictor.2} parent=71 // pred_region
                loop: start=0, step=1, limit=1
                $region88: #{dense_predictor.2} parent=86 // loop_pre_header
                  _
                $region89: #{dense_predictor.2} parent=86 // loop_header
                  %s1195 = sphi 0, %s1199
                  %p1196 = scmp.ge.s32.totalorder %s1195, 1
                  %s1200 = sphi %s1149, %s1149
                  %s1201 = sphi %s1160, %s1160
                $region90: #{dense_predictor.2} parent=86 // loop_header_branch
                  %1198 = sbr.rel (%p1196) target = $region94
                $region91: #{dense_predictor.2} parent=86 // loop_body
                  %v1202 = vld [vmem:[%s1200] sm:$0xff]
                  %1203 = vst [vmem:[%s1201] sm:$0xff] %v1202
                  %v1204 = vld [vmem:[%s1200 + $0x8] sm:$0xff]
                  %1205 = vst [vmem:[%s1201 + $0x20] sm:$0xff] %v1204
                  %v1206 = vld [vmem:[%s1200 + $0x10] sm:$0xff]
                  %1207 = vst [vmem:[%s1201 + $0x40] sm:$0xff] %v1206
                  %v1208 = vld [vmem:[%s1200 + $0x18] sm:$0xff]
                  %1209 = vst [vmem:[%s1201 + $0x60] sm:$0xff] %v1208
                  %v1210 = vld [vmem:[%s1200 + $0x20] sm:$0xff]
                  %1211 = vst [vmem:[%s1201 + $0x80] sm:$0xff] %v1210
                  %v1212 = vld [vmem:[%s1200 + $0x28] sm:$0xff]
                  %1213 = vst [vmem:[%s1201 + $0xa0] sm:$0xff] %v1212
                  %v1214 = vld [vmem:[%s1200 + $0x30] sm:$0xff]
                  %1215 = vst [vmem:[%s1201 + $0xc0] sm:$0xff] %v1214
                  %v1216 = vld [vmem:[%s1200 + $0x38] sm:$0xff]
                  %1217 = vst [vmem:[%s1201 + $0xe0] sm:$0xff] %v1216
                $region92: #{dense_predictor.2} parent=86 // loop_footer
                  %s1199 = sadd.s32 1, %s1195
                $region93: #{dense_predictor.2} parent=86 // loop_footer_branch
                  %1194 = sbr.rel target = $region89
                $region94: #{dense_predictor.2} parent=86 // loop_exit
                  _
              $region87: #{dense_predictor.2} parent=71 // pred_fallthru
                _
              // Predicated region
              $region95: #{dense_predictor.2} parent=71 // pred_check
                _
              $region96: #{dense_predictor.2} parent=71 // pred_check_branch
                %1219 = sbr.rel target = $region98
              $region97: #{dense_predictor.2} parent=71 // pred_region
                _
              $region98: #{dense_predictor.2} parent=71 // pred_fallthru
                _
            $region72: #{dense_predictor.2} parent=67 // pred_fallthru
              _
            // Predicated region
            $region73: #{dense_predictor.2} parent=67 // pred_check
              _
            $region74: #{dense_predictor.2} parent=67 // pred_check_branch
              %1166 = sbr.rel target = $region76
            $region75: #{dense_predictor.2} parent=67 // pred_region
              loop: start=0, step=1, limit=1
              $region77: #{dense_predictor.2} parent=75 // loop_pre_header
                _
              $region78: #{dense_predictor.2} parent=75 // loop_header
                %s1169 = sphi 0, %s1173
                %p1170 = scmp.ge.s32.totalorder %s1169, 1
                %s1174 = sphi %s1149, %s1149
                %s1175 = sphi %s1160, %s1160
              $region79: #{dense_predictor.2} parent=75 // loop_header_branch
                %1172 = sbr.rel (%p1170) target = $region83
              $region80: #{dense_predictor.2} parent=75 // loop_body
                %v1176 = vld [vmem:[%s1174] sm:$0xff]
                %1177 = vst [vmem:[%s1175] sm:$0xff] %v1176
                %v1178 = vld [vmem:[%s1174 + $0x8] sm:$0xff]
                %1179 = vst [vmem:[%s1175 + $0x20] sm:$0xff] %v1178
                %v1180 = vld [vmem:[%s1174 + $0x10] sm:$0xff]
                %1181 = vst [vmem:[%s1175 + $0x40] sm:$0xff] %v1180
                %v1182 = vld [vmem:[%s1174 + $0x18] sm:$0xff]
                %1183 = vst [vmem:[%s1175 + $0x60] sm:$0xff] %v1182
                %v1184 = vld [vmem:[%s1174 + $0x20] sm:$0xff]
                %1185 = vst [vmem:[%s1175 + $0x80] sm:$0xff] %v1184
                %v1186 = vld [vmem:[%s1174 + $0x28] sm:$0xff]
                %1187 = vst [vmem:[%s1175 + $0xa0] sm:$0xff] %v1186
                %v1188 = vld [vmem:[%s1174 + $0x30] sm:$0xff]
                %1189 = vst [vmem:[%s1175 + $0xc0] sm:$0xff] %v1188
                %v1190 = vld [vmem:[%s1174 + $0x38] sm:$0xff]
                %1191 = vst [vmem:[%s1175 + $0xe0] sm:$0xff] %v1190
              $region81: #{dense_predictor.2} parent=75 // loop_footer
                %s1173 = sadd.s32 1, %s1169
              $region82: #{dense_predictor.2} parent=75 // loop_footer_branch
                %1168 = sbr.rel target = $region78
              $region83: #{dense_predictor.2} parent=75 // loop_exit
                _
            $region76: #{dense_predictor.2} parent=67 // pred_fallthru
              _
          $region68: #{dense_predictor.2} parent=63 // pred_fallthru
            _
          %1220 = vnop
        $region64: #{dense_predictor.2} parent=51 // pred_fallthru
          _
        // Predicated region
        $region99: #{dense_predictor.2} parent=51 // pred_check
          %p1221 = pneg %p261
        $region100: #{dense_predictor.2} parent=51 // pred_check_branch
          %1223 = sbr.rel (%p1221) target = $region102
        $region101: #{dense_predictor.2} parent=51 // pred_region
          _
        $region102: #{dense_predictor.2} parent=51 // pred_fallthru
          _
      $region52: #{dense_predictor.2} parent=5 // pred_fallthru
        _
      %p1224 = scmp.le.s32.totalorder 2, %s16
      // Predicated region
      $region103: #{dense_predictor.2} parent=5 // pred_check
        %p1225 = pneg %p1224
      $region104: #{dense_predictor.2} parent=5 // pred_check_branch
        %1227 = sbr.rel (%p1225) target = $region106
      $region105: #{dense_predictor.2} parent=5 // pred_region
        %s1228 = ssub.s32 %s16, 2
        // Predicated region
        $region107: #{dense_predictor.2} parent=105 // pred_check
          %p1229 = pneg %p241
        $region108: #{dense_predictor.2} parent=105 // pred_check_branch
          %1231 = sbr.rel (%p1229) target = $region110
        $region109: #{dense_predictor.2} parent=105 // pred_region
          %s1232 = sand.u32 %s226, 1
          %s1233 = sand.u32 %s226, 1
          %s1234 = smul.addr %s1233, 64
          %s1235 = scalar_lea.vmem [#allocation3], %s1234
        $region110: #{dense_predictor.2} parent=105 // pred_fallthru
          _
        // Predicated region
        $region111: #{dense_predictor.2} parent=105 // pred_check
          %p1236 = pneg %p267
        $region112: #{dense_predictor.2} parent=105 // pred_check_branch
          %1238 = sbr.rel (%p1236) target = $region114
        $region113: #{dense_predictor.2} parent=105 // pred_region
          %p1239 = scmp.lt.s32.totalorder %s27, 1
          %s1240 = scalar_select %p1239, %s27, 1
          %s1241 = smul.addr %s1240, 2
          %s1242 = scalar_lea.vmem %s9, %s1241
        $region114: #{dense_predictor.2} parent=105 // pred_fallthru
          _
      $region106: #{dense_predictor.2} parent=5 // pred_fallthru
        _
    $region6: #{dense_predictor.2} parent=1 // loop_footer
      %s20 = sadd.s32 1, %s16
    $region7: #{dense_predictor.2} parent=1 // loop_footer_branch
      %15 = sbr.rel target = $region3
    $region8: #{dense_predictor.2} parent=1 // loop_exit
      _

</llo_original>
